<compile_context>
chip_gen: v6e
topology: v6e:2x2x1
jax: 0.10.0
libtpu: 0.0.40
codegen_flags: <defaults>
</compile_context>

<pallas_src>
import jax
import jax.numpy as jnp
from jax.experimental import pallas as pl
from jax.experimental.pallas import tpu as pltpu

N_GRAPHS = 16        # graphs per forward call (batch)
N_NODES = 16         # nodes per graph
BN = N_GRAPHS * N_NODES          # 256 total nodes -> MXU contraction depth
IN_FEAT = 32         # true input node feature dim
GCN_HIDDEN = 64      # true backbone hidden dim
MLP_HIDDEN = 32      # true MLP hidden dim
N_CLASSES = 2        # vulnerable / not vulnerable
PAD = 128            # lane-dense padded width for all feature dims
COMPUTE_DTYPE = jnp.bfloat16


# ----------------------------- Pallas kernel -----------------------------

def _vuln_fused_kernel(a_ref, x_ref, w_ref, b_ref, o_ref):
    """Fused forward for the whole batch (one grid step):
         H1 = ReLU(A_blk @ (X  @ W1) + b1)          A_blk: [BN,BN] block-diag adjacency
         H2 = ReLU(A_blk @ (H1 @ W2) + b2)
         p  = S @ H2                                 S generated in-kernel, S[b,m]=1/N on graph b
         out = ReLU(p @ Wm1 + bm1) @ Wm2 + bm2       (all dims lane-padded to 128)
    """
    cd = a_ref.dtype
    a = a_ref[...]                         # [BN, BN] bf16 block-diagonal adjacency
    biases = b_ref[...]                    # [8, 128]  f32 bias slab
    bg1 = biases[0:1, :]
    bg2 = biases[1:2, :]
    bm1 = biases[2:3, :]
    bm2 = biases[3:4, :]

    # ---- GCN layer 1: one [BN,128]@[128,128] then one [BN,BN]@[BN,128]
    xw = jnp.dot(x_ref[...], w_ref[0], preferred_element_type=jnp.float32)
    h = jnp.dot(a, xw.astype(cd), preferred_element_type=jnp.float32)
    h = jnp.maximum(h + bg1, 0.0)                                   # [BN, 128] f32

    # ---- GCN layer 2
    hw = jnp.dot(h.astype(cd), w_ref[1], preferred_element_type=jnp.float32)
    h2 = jnp.dot(a, hw.astype(cd), preferred_element_type=jnp.float32)
    h2 = jnp.maximum(h2 + bg2, 0.0)                                 # [BN, 128] f32

    # ---- mean readout on the MXU against an in-kernel generated selector matrix
    rows = jax.lax.broadcasted_iota(jnp.int32, (N_GRAPHS, BN), 0)
    cols = jax.lax.broadcasted_iota(jnp.int32, (N_GRAPHS, BN), 1)
    lo = rows * N_NODES
    sel = jnp.where((cols >= lo) & (cols < lo + N_NODES),
                    1.0 / N_NODES, 0.0).astype(cd)                  # [B, BN]
    pooled = jnp.dot(sel, h2.astype(cd), preferred_element_type=jnp.float32)  # [B,128]

    # ---- MLP classifier (class dim lane-padded -> unmasked stores)
    z = jnp.maximum(
        jnp.dot(pooled.astype(cd), w_ref[2],
                preferred_element_type=jnp.float32) + bm1, 0.0)
    logits = jnp.dot(z.astype(cd), w_ref[3],
                     preferred_element_type=jnp.float32) + bm2
    o_ref[...] = logits                                             # [B, 128] f32


# ------------------------------ wrappers ----------------------------------

def vulnerability_final_forward(w_slab, b_slab, a_blk, x_flat):
    """Equivalent of Vulnerability_final.forward: mlp(backbone(my_data, edge_index)),
    for the whole batch of graphs in a single fused pallas_call."""
    out = pl.pallas_call(
        _vuln_fused_kernel,
        out_shape=jax.ShapeDtypeStruct((N_GRAPHS, PAD), jnp.float32),
        grid_spec=pl.GridSpec(
            grid=(1,),
            in_specs=[
                pl.BlockSpec((BN, BN), lambda g: (0, 0)),        # A block-diag
                pl.BlockSpec((BN, PAD), lambda g: (0, 0)),       # X flattened+padded
                pl.BlockSpec((4, PAD, PAD), lambda g: (0, 0, 0)),  # weight slab
                pl.BlockSpec((8, PAD), lambda g: (0, 0)),        # bias slab
            ],
            out_specs=pl.BlockSpec((N_GRAPHS, PAD), lambda g: (0, 0)),
        ),
    )(a_blk, x_flat, w_slab, b_slab)
    return out[:, :N_CLASSES]


def normalized_adjacency(edge_index, num_nodes):
    """Symmetric GCN normalization D^-1/2 (A + I) D^-1/2 from an edge list.
    Computed ONCE per graph (hoisted out of the per-forward path)."""
    src, dst = edge_index[0], edge_index[1]
    a = jnp.zeros((num_nodes, num_nodes), jnp.float32)
    a = a.at[src, dst].set(1.0)
    a = a.at[dst, src].set(1.0)                                    # undirected
    a = jnp.maximum(a, jnp.eye(num_nodes, dtype=jnp.float32))      # self loops
    deg = jnp.sum(a, axis=1)
    d_inv_sqrt = jax.lax.rsqrt(deg)
    return a * d_inv_sqrt[:, None] * d_inv_sqrt[None, :]


def build_block_diag(a_norm):
    """[B, N, N] batched adjacencies -> [B*N, B*N] block-diagonal matrix (one-time)."""
    b, n, _ = a_norm.shape
    eye = jnp.eye(b, dtype=a_norm.dtype)
    return jnp.einsum("bij,bc->bicj", a_norm, eye).reshape(b * n, b * n)


def _pad2(a, rows=PAD, cols=PAD):
    out = jnp.zeros((rows, cols), jnp.float32)
    return out.at[:a.shape[0], :a.shape[1]].set(a)


def build_param_slabs(params):
    """Consolidate 8 small weight/bias tensors into one bf16 weight slab and one f32
    bias slab (zero-padded to 128 lanes -> numerically exact)."""
    w_slab = jnp.stack([
        _pad2(params["w_gcn1"]),   # [32,  64] -> [128,128]
        _pad2(params["w_gcn2"]),   # [64,  64] -> [128,128]
        _pad2(params["w_mlp1"]),   # [64,  32] -> [128,128]
        _pad2(params["w_mlp2"]),   # [32,   2] -> [128,128]
    ], axis=0).astype(COMPUTE_DTYPE)                  # [4, 128, 128] bf16
    b_slab = jnp.zeros((8, PAD), jnp.float32)
    b_slab = b_slab.at[0, :GCN_HIDDEN].set(params["b_gcn1"][0])
    b_slab = b_slab.at[1, :GCN_HIDDEN].set(params["b_gcn2"][0])
    b_slab = b_slab.at[2, :MLP_HIDDEN].set(params["b_mlp1"][0])
    b_slab = b_slab.at[3, :N_CLASSES].set(params["b_mlp2"][0])
    return w_slab, b_slab


def init_params():
    """Deterministic synthetic parameters (no checkpoint load)."""
    k = jax.random.PRNGKey(42)
    k1, k2, k3, k4, k5, k6, k7, k8 = jax.random.split(k, 8)
    s = 0.1
    return {
        "w_gcn1": s * jax.random.normal(k1, (IN_FEAT, GCN_HIDDEN), jnp.float32),
        "b_gcn1": 0.01 * jax.random.normal(k5, (1, GCN_HIDDEN), jnp.float32),
        "w_gcn2": s * jax.random.normal(k2, (GCN_HIDDEN, GCN_HIDDEN), jnp.float32),
        "b_gcn2": 0.01 * jax.random.normal(k6, (1, GCN_HIDDEN), jnp.float32),
        "w_mlp1": s * jax.random.normal(k3, (GCN_HIDDEN, MLP_HIDDEN), jnp.float32),
        "b_mlp1": 0.01 * jax.random.normal(k7, (1, MLP_HIDDEN), jnp.float32),
        "w_mlp2": s * jax.random.normal(k4, (MLP_HIDDEN, N_CLASSES), jnp.float32),
        "b_mlp2": 0.01 * jax.random.normal(k8, (1, N_CLASSES), jnp.float32),
    }


def reference_forward(params, a_norm, x):
    """Pure-JAX reference with the same bf16-operand / f32-accumulate arithmetic."""
    cd = COMPUTE_DTYPE
    b, n, _ = x.shape
    a = a_norm.astype(cd)
    xw = jnp.einsum("bnf,fh->bnh", x.astype(cd), params["w_gcn1"].astype(cd),
                    preferred_element_type=jnp.float32)
    h = jnp.einsum("bij,bjh->bih", a, xw.astype(cd),
                   preferred_element_type=jnp.float32)
    h = jnp.maximum(h + params["b_gcn1"], 0.0)
    hw = jnp.einsum("bnh,hk->bnk", h.astype(cd), params["w_gcn2"].astype(cd),
                    preferred_element_type=jnp.float32)
    h2 = jnp.einsum("bij,bjh->bih", a, hw.astype(cd),
                    preferred_element_type=jnp.float32)
    h2 = jnp.maximum(h2 + params["b_gcn2"], 0.0)
    pooled = jnp.mean(h2.astype(cd).astype(jnp.float32), axis=1)     # [B, H]
    z = jnp.maximum(
        jnp.dot(pooled.astype(cd), params["w_mlp1"].astype(cd),
                preferred_element_type=jnp.float32) + params["b_mlp1"], 0.0)
    logits = jnp.dot(z.astype(cd), params["w_mlp2"].astype(cd),
                     preferred_element_type=jnp.float32) + params["b_mlp2"]
    return logits


# ------------------------------- main --------------------------------------

if __name__ == "__main__":
    key = jax.random.PRNGKey(0)
    k_x, k_e = jax.random.split(key)

    # node features: B graphs x N nodes x F features
    x = jax.random.normal(k_x, (N_GRAPHS, N_NODES, IN_FEAT), jnp.float32)

    # deterministic per-graph topology: ring + 4 random chords per graph
    ring_src = jnp.arange(N_NODES, dtype=jnp.int32)
    ring_dst = (ring_src + 1) % N_NODES
    ring = jnp.broadcast_to(jnp.stack([ring_src, ring_dst], axis=0),
                            (N_GRAPHS, 2, N_NODES))
    chords = jax.random.randint(k_e, (N_GRAPHS, 2, 4), 0, N_NODES, dtype=jnp.int32)
    edge_index = jnp.concatenate([ring, chords], axis=-1)        # [B, 2, 20]

    # one-time (per graph set / per param set) host-side preparation — hoisted out
    # of the per-forward path: GCN normalization, block-diagonalization, flattening,
    # lane padding, and weight/bias slab consolidation.
    a_norm = jax.vmap(lambda e: normalized_adjacency(e, N_NODES))(edge_index)
    a_blk = build_block_diag(a_norm).astype(COMPUTE_DTYPE)               # [256, 256]
    x_flat = (jnp.zeros((BN, PAD), jnp.float32)
              .at[:, :IN_FEAT].set(x.reshape(BN, IN_FEAT))
              .astype(COMPUTE_DTYPE))                                    # [256, 128]

    params = init_params()
    w_slab, b_slab = build_param_slabs(params)

    forward = jax.jit(vulnerability_final_forward)
    out = jax.block_until_ready(forward(w_slab, b_slab, a_blk, x_flat))

    assert out.shape == (N_GRAPHS, N_CLASSES), out.shape
    assert bool(jnp.all(jnp.isfinite(out)))

    ref = reference_forward(params, a_norm, x)
    assert jnp.allclose(out, ref, rtol=2e-2, atol=2e-2), \
        float(jnp.max(jnp.abs(out - ref)))

    print("KERNEL_OK")
</pallas_src>

<mosaic_0001>
module attributes {stable_mosaic.version = 11 : i64} {
  func.func @_vuln_fused_kernel(%arg0: i32, %arg1: memref<256x256xbf16, #tpu.memory_space<vmem>>, %arg2: memref<256x128xbf16, #tpu.memory_space<vmem>>, %arg3: memref<4x128x128xbf16, #tpu.memory_space<vmem>>, %arg4: memref<8x128xf32, #tpu.memory_space<vmem>>, %arg5: memref<16x128xf32, #tpu.memory_space<vmem>>) attributes {dimension_semantics = [#tpu.dimension_semantics<arbitrary>], iteration_bounds = array<i64: 1>, scalar_prefetch = 0 : i64, scratch_operands = 0 : i64, tpu.core_type = #tpu.core_type<tc>, window_params = [{pipeline_mode = #tpu.pipeline_mode<synchronous>, transform_indices = @transform_0, window_bounds = array<i64: 256, 256>}, {pipeline_mode = #tpu.pipeline_mode<synchronous>, transform_indices = @transform_1, window_bounds = array<i64: 256, 128>}, {pipeline_mode = #tpu.pipeline_mode<synchronous>, transform_indices = @transform_2, window_bounds = array<i64: 4, 128, 128>}, {pipeline_mode = #tpu.pipeline_mode<synchronous>, transform_indices = @transform_3, window_bounds = array<i64: 8, 128>}, {pipeline_mode = #tpu.pipeline_mode<synchronous>, transform_indices = @transform_4, window_bounds = array<i64: 16, 128>}]} {
    %c0 = arith.constant 0 : index
    %c0_0 = arith.constant 0 : index
    %0 = vector.load %arg1[%c0, %c0_0] : memref<256x256xbf16, #tpu.memory_space<vmem>>, vector<256x256xbf16>
    %c0_1 = arith.constant 0 : index
    %c0_2 = arith.constant 0 : index
    %1 = vector.load %arg4[%c0_1, %c0_2] : memref<8x128xf32, #tpu.memory_space<vmem>>, vector<8x128xf32>
    %2 = vector.extract_strided_slice %1 {offsets = [0, 0], sizes = [1, 128], strides = [1, 1]} : vector<8x128xf32> to vector<1x128xf32>
    %3 = vector.extract_strided_slice %1 {offsets = [1, 0], sizes = [1, 128], strides = [1, 1]} : vector<8x128xf32> to vector<1x128xf32>
    %4 = vector.extract_strided_slice %1 {offsets = [2, 0], sizes = [1, 128], strides = [1, 1]} : vector<8x128xf32> to vector<1x128xf32>
    %5 = vector.extract_strided_slice %1 {offsets = [3, 0], sizes = [1, 128], strides = [1, 1]} : vector<8x128xf32> to vector<1x128xf32>
    %c0_3 = arith.constant 0 : index
    %c0_4 = arith.constant 0 : index
    %6 = vector.load %arg2[%c0_3, %c0_4] : memref<256x128xbf16, #tpu.memory_space<vmem>>, vector<256x128xbf16>
    %c0_5 = arith.constant 0 : index
    %c0_6 = arith.constant 0 : index
    %c0_7 = arith.constant 0 : index
    %7 = vector.load %arg3[%c0_5, %c0_6, %c0_7] : memref<4x128x128xbf16, #tpu.memory_space<vmem>>, vector<1x128x128xbf16>
    %8 = vector.shape_cast %7 : vector<1x128x128xbf16> to vector<128x128xbf16>
    %cst = arith.constant dense<0.000000e+00> : vector<256x128xf32>
    %9 = tpu.matmul %6, %8, %cst {dimension_numbers = #tpu.dot_dimension_numbers<[1], [0], [0], [1], [0, 0, 1, 1], [], []>} : vector<256x128xbf16>, vector<128x128xbf16>, vector<256x128xf32> -> vector<256x128xf32>
    %10 = arith.truncf %9 : vector<256x128xf32> to vector<256x128xbf16>
    %cst_8 = arith.constant dense<0.000000e+00> : vector<256x128xf32>
    %11 = tpu.matmul %0, %10, %cst_8 {dimension_numbers = #tpu.dot_dimension_numbers<[1], [0], [0], [1], [0, 0, 1, 1], [], []>} : vector<256x256xbf16>, vector<256x128xbf16>, vector<256x128xf32> -> vector<256x128xf32>
    %12 = vector.broadcast %2 : vector<1x128xf32> to vector<256x128xf32>
    %13 = arith.addf %11, %12 : vector<256x128xf32>
    %cst_9 = arith.constant 0.000000e+00 : f32
    %14 = vector.broadcast %cst_9 : f32 to vector<256x128xf32>
    %15 = arith.maximumf %13, %14 : vector<256x128xf32>
    %16 = arith.truncf %15 : vector<256x128xf32> to vector<256x128xbf16>
    %c1 = arith.constant 1 : index
    %c0_10 = arith.constant 0 : index
    %c0_11 = arith.constant 0 : index
    %17 = vector.load %arg3[%c1, %c0_10, %c0_11] : memref<4x128x128xbf16, #tpu.memory_space<vmem>>, vector<1x128x128xbf16>
    %18 = vector.shape_cast %17 : vector<1x128x128xbf16> to vector<128x128xbf16>
    %cst_12 = arith.constant dense<0.000000e+00> : vector<256x128xf32>
    %19 = tpu.matmul %16, %18, %cst_12 {dimension_numbers = #tpu.dot_dimension_numbers<[1], [0], [0], [1], [0, 0, 1, 1], [], []>} : vector<256x128xbf16>, vector<128x128xbf16>, vector<256x128xf32> -> vector<256x128xf32>
    %20 = arith.truncf %19 : vector<256x128xf32> to vector<256x128xbf16>
    %cst_13 = arith.constant dense<0.000000e+00> : vector<256x128xf32>
    %21 = tpu.matmul %0, %20, %cst_13 {dimension_numbers = #tpu.dot_dimension_numbers<[1], [0], [0], [1], [0, 0, 1, 1], [], []>} : vector<256x256xbf16>, vector<256x128xbf16>, vector<256x128xf32> -> vector<256x128xf32>
    %22 = vector.broadcast %3 : vector<1x128xf32> to vector<256x128xf32>
    %23 = arith.addf %21, %22 : vector<256x128xf32>
    %cst_14 = arith.constant 0.000000e+00 : f32
    %24 = vector.broadcast %cst_14 : f32 to vector<256x128xf32>
    %25 = arith.maximumf %23, %24 : vector<256x128xf32>
    %26 = tpu.iota {dimensions = array<i32: 0>} : vector<16x256xi32>
    %27 = tpu.iota {dimensions = array<i32: 1>} : vector<16x256xi32>
    %c16_i32 = arith.constant 16 : i32
    %28 = vector.broadcast %c16_i32 : i32 to vector<16x256xi32>
    %29 = arith.muli %26, %28 : vector<16x256xi32>
    %30 = arith.cmpi sge, %27, %29 : vector<16x256xi32>
    %c16_i32_15 = arith.constant 16 : i32
    %31 = vector.broadcast %c16_i32_15 : i32 to vector<16x256xi32>
    %32 = arith.addi %29, %31 : vector<16x256xi32>
    %33 = arith.cmpi slt, %27, %32 : vector<16x256xi32>
    %34 = arith.andi %30, %33 : vector<16x256xi1>
    %cst_16 = arith.constant 6.250000e-02 : f32
    %cst_17 = arith.constant 0.000000e+00 : f32
    %35 = vector.broadcast %cst_16 : f32 to vector<16x256xf32>
    %36 = vector.broadcast %cst_17 : f32 to vector<16x256xf32>
    %37 = arith.select %34, %35, %36 : vector<16x256xi1>, vector<16x256xf32>
    %38 = arith.truncf %37 : vector<16x256xf32> to vector<16x256xbf16>
    %39 = arith.truncf %25 : vector<256x128xf32> to vector<256x128xbf16>
    %cst_18 = arith.constant dense<0.000000e+00> : vector<16x128xf32>
    %40 = tpu.matmul %38, %39, %cst_18 {dimension_numbers = #tpu.dot_dimension_numbers<[1], [0], [0], [1], [0, 0, 1, 1], [], []>} : vector<16x256xbf16>, vector<256x128xbf16>, vector<16x128xf32> -> vector<16x128xf32>
    %41 = arith.truncf %40 : vector<16x128xf32> to vector<16x128xbf16>
    %c2 = arith.constant 2 : index
    %c0_19 = arith.constant 0 : index
    %c0_20 = arith.constant 0 : index
    %42 = vector.load %arg3[%c2, %c0_19, %c0_20] : memref<4x128x128xbf16, #tpu.memory_space<vmem>>, vector<1x128x128xbf16>
    %43 = vector.shape_cast %42 : vector<1x128x128xbf16> to vector<128x128xbf16>
    %cst_21 = arith.constant dense<0.000000e+00> : vector<16x128xf32>
    %44 = tpu.matmul %41, %43, %cst_21 {dimension_numbers = #tpu.dot_dimension_numbers<[1], [0], [0], [1], [0, 0, 1, 1], [], []>} : vector<16x128xbf16>, vector<128x128xbf16>, vector<16x128xf32> -> vector<16x128xf32>
    %45 = vector.broadcast %4 : vector<1x128xf32> to vector<16x128xf32>
    %46 = arith.addf %44, %45 : vector<16x128xf32>
    %cst_22 = arith.constant 0.000000e+00 : f32
    %47 = vector.broadcast %cst_22 : f32 to vector<16x128xf32>
    %48 = arith.maximumf %46, %47 : vector<16x128xf32>
    %49 = arith.truncf %48 : vector<16x128xf32> to vector<16x128xbf16>
    %c3 = arith.constant 3 : index
    %c0_23 = arith.constant 0 : index
    %c0_24 = arith.constant 0 : index
    %50 = vector.load %arg3[%c3, %c0_23, %c0_24] : memref<4x128x128xbf16, #tpu.memory_space<vmem>>, vector<1x128x128xbf16>
    %51 = vector.shape_cast %50 : vector<1x128x128xbf16> to vector<128x128xbf16>
    %cst_25 = arith.constant dense<0.000000e+00> : vector<16x128xf32>
    %52 = tpu.matmul %49, %51, %cst_25 {dimension_numbers = #tpu.dot_dimension_numbers<[1], [0], [0], [1], [0, 0, 1, 1], [], []>} : vector<16x128xbf16>, vector<128x128xbf16>, vector<16x128xf32> -> vector<16x128xf32>
    %53 = vector.broadcast %5 : vector<1x128xf32> to vector<16x128xf32>
    %54 = arith.addf %52, %53 : vector<16x128xf32>
    %c0_26 = arith.constant 0 : index
    %c0_27 = arith.constant 0 : index
    %55 = vector.load %arg5[%c0_26, %c0_27] : memref<16x128xf32, #tpu.memory_space<vmem>>, vector<16x128xf32>
    tpu.vector_store %arg5[%c0_26, %c0_27], %54 {strides = array<i32>} : memref<16x128xf32, #tpu.memory_space<vmem>>, vector<16x128xf32>,
    return
  }
  func.func @transform_0(%arg0: i32) -> (i32, i32) {
    %c0_i32 = arith.constant 0 : i32
    %c0_i32_0 = arith.constant 0 : i32
    %c0_i32_1 = arith.constant 0 : i32
    return %c0_i32, %c0_i32_0 : i32, i32
  }
  func.func @transform_1(%arg0: i32) -> (i32, i32) {
    %c0_i32 = arith.constant 0 : i32
    %c0_i32_0 = arith.constant 0 : i32
    %c0_i32_1 = arith.constant 0 : i32
    return %c0_i32, %c0_i32_0 : i32, i32
  }
  func.func @transform_2(%arg0: i32) -> (i32, i32, i32) {
    %c0_i32 = arith.constant 0 : i32
    %c0_i32_0 = arith.constant 0 : i32
    %c0_i32_1 = arith.constant 0 : i32
    %c0_i32_2 = arith.constant 0 : i32
    return %c0_i32, %c0_i32_0, %c0_i32_1 : i32, i32, i32
  }
  func.func @transform_3(%arg0: i32) -> (i32, i32) {
    %c0_i32 = arith.constant 0 : i32
    %c0_i32_0 = arith.constant 0 : i32
    %c0_i32_1 = arith.constant 0 : i32
    return %c0_i32, %c0_i32_0 : i32, i32
  }
  func.func @transform_4(%arg0: i32) -> (i32, i32) {
    %c0_i32 = arith.constant 0 : i32
    %c0_i32_0 = arith.constant 0 : i32
    %c0_i32_1 = arith.constant 0 : i32
    return %c0_i32, %c0_i32_0 : i32, i32
  }
}

</mosaic_0001>

<llo_original>
// kernel: vulnerability_final_forward.1
$region0: #{vulnerability_final_forward.1}
  #allocation0 [shape = 'u32[]', space=smem, size = 0x4, offset = 0x4, fixed_abs, tag = 'smem constant byte address 0x4 - core index']
  #allocation1 [shape = 'u32[144,128]{1,0:T(1,128)}', space=vmem, size = 0x12000, scoped, tag = 'internal scratch']
  %s0 = inlined_call_operand.hbm [shape: bf16[256,256], index: 0, kind: input, shape index: {}]
  %s1 = inlined_call_operand.hbm [shape: bf16[256,128], index: 1, kind: input, shape index: {}]
  %s2 = inlined_call_operand.hbm [shape: bf16[4,128,128], index: 2, kind: input, shape index: {}]
  %s3 = inlined_call_operand.hbm [shape: f32[8,128], index: 3, kind: input, shape index: {}]
  %s4 = inlined_call_operand.vmem [shape: f32[16,128], index: 4, kind: output, shape index: {}]
  %s5 = sld [smem:[#allocation0]]
  $region42: #{vulnerability_final_forward.1} parent=0
    _
  %s7 = ssub.s32 1, %s5
  %s8 = scalar_select 0, %s7, %s5
  $region1: #{vulnerability_final_forward.1} parent=0
    #allocation2 [shape = 'u8[131072]{0}', space=vmem, size = 0x20000, scoped, tag = 'input window, operand 0, single buffered']
    #allocation3 [shape = 's32[1]{0}', space=sflag, size = 0x4, scoped, tag = 'scoped memory for vulnerability_final_forward.1']
    #allocation4 [shape = 'u8[65536]{0}', space=vmem, size = 0x10000, scoped, tag = 'input window, operand 1, single buffered']
    #allocation5 [shape = 's32[1]{0}', space=sflag, size = 0x4, scoped, tag = 'scoped memory for vulnerability_final_forward.1']
    #allocation6 [shape = 'u8[131072]{0}', space=vmem, size = 0x20000, scoped, tag = 'input window, operand 2, single buffered']
    #allocation7 [shape = 'u8[4096]{0}', space=vmem, size = 0x1000, scoped, tag = 'input window, operand 3, single buffered']
    #allocation8 [shape = 's32[1]{0}', space=sflag, size = 0x4, scoped, tag = 'scoped memory for vulnerability_final_forward.1']
    %9 = vsyncpa [#allocation3], 0
    %10 = vsyncpa [#allocation5], 0
    %11 = vsyncpa [#allocation8], 0
    // Predicated region
    $region2: #{vulnerability_final_forward.1} parent=1 // pred_check
      _
    $region3: #{vulnerability_final_forward.1} parent=1 // pred_check_branch
      %13 = sbr.rel (0) target = $region5
    $region4: #{vulnerability_final_forward.1} parent=1 // pred_region
      %s15 = ssub.s32 4096, 4096
      %16 = vsyncadd [#allocation3], %s15
      %s17 = sshll.u32 [#allocation2], 4
      %s18 = int_to_ptr.vmem [resolvable:$true] %s17
      %23 = dma.hbm_to_vmem [thread:$0]  %s0, 4096, %s18, [#allocation3], 128, 128, 8
    $region5: #{vulnerability_final_forward.1} parent=1 // pred_fallthru
      _
    // Predicated region
    $region6: #{vulnerability_final_forward.1} parent=1 // pred_check
      _
    $region7: #{vulnerability_final_forward.1} parent=1 // pred_check_branch
      %25 = sbr.rel (0) target = $region9
    $region8: #{vulnerability_final_forward.1} parent=1 // pred_region
      %s27 = ssub.s32 2048, 2048
      %28 = vsyncadd [#allocation5], %s27
      %s29 = sshll.u32 [#allocation4], 4
      %s30 = int_to_ptr.vmem [resolvable:$true] %s29
      %35 = dma.hbm_to_vmem [thread:$0]  %s1, 2048, %s30, [#allocation5], 64, 64, 4
    $region9: #{vulnerability_final_forward.1} parent=1 // pred_fallthru
      _
    // Predicated region
    $region10: #{vulnerability_final_forward.1} parent=1 // pred_check
      _
    $region11: #{vulnerability_final_forward.1} parent=1 // pred_check_branch
      %37 = sbr.rel (0) target = $region13
    $region12: #{vulnerability_final_forward.1} parent=1 // pred_region
      %s39 = ssub.s32 4096, 4096
      %40 = vsyncadd [#allocation5], %s39
      %s41 = sshll.u32 [#allocation6], 4
      %s42 = int_to_ptr.vmem [resolvable:$true] %s41
      %47 = dma.hbm_to_vmem [thread:$0]  %s2, 4096, %s42, [#allocation5], 64, 64, 4
    $region13: #{vulnerability_final_forward.1} parent=1 // pred_fallthru
      _
    // Predicated region
    $region14: #{vulnerability_final_forward.1} parent=1 // pred_check
      _
    $region15: #{vulnerability_final_forward.1} parent=1 // pred_check_branch
      %49 = sbr.rel (0) target = $region17
    $region16: #{vulnerability_final_forward.1} parent=1 // pred_region
      %s51 = ssub.s32 128, 128
      %52 = vsyncadd [#allocation8], %s51
      %s54 = sshll.u32 [#allocation7], 4
      %s55 = int_to_ptr.vmem [resolvable:$true] %s54
      %57 = dma.hbm_to_vmem [thread:$0]  %s3, 128, %s55, [#allocation8]
    $region17: #{vulnerability_final_forward.1} parent=1 // pred_fallthru
      _
    // Predicated region
    $region18: #{vulnerability_final_forward.1} parent=1 // pred_check
      _
    $region19: #{vulnerability_final_forward.1} parent=1 // pred_check_branch
      %59 = sbr.rel (0) target = $region21
    $region20: #{vulnerability_final_forward.1} parent=1 // pred_region
      %60 = dma.done [#allocation3], 4096
    $region21: #{vulnerability_final_forward.1} parent=1 // pred_fallthru
      _
    // Predicated region
    $region22: #{vulnerability_final_forward.1} parent=1 // pred_check
      _
    $region23: #{vulnerability_final_forward.1} parent=1 // pred_check_branch
      %62 = sbr.rel (0) target = $region25
    $region24: #{vulnerability_final_forward.1} parent=1 // pred_region
      %63 = dma.done [#allocation5], 2048
    $region25: #{vulnerability_final_forward.1} parent=1 // pred_fallthru
      _
    // Predicated region
    $region26: #{vulnerability_final_forward.1} parent=1 // pred_check
      _
    $region27: #{vulnerability_final_forward.1} parent=1 // pred_check_branch
      %65 = sbr.rel (0) target = $region29
    $region28: #{vulnerability_final_forward.1} parent=1 // pred_region
      %66 = dma.done [#allocation5], 4096
    $region29: #{vulnerability_final_forward.1} parent=1 // pred_fallthru
      _
    // Predicated region
    $region30: #{vulnerability_final_forward.1} parent=1 // pred_check
      _
    $region31: #{vulnerability_final_forward.1} parent=1 // pred_check_branch
      %68 = sbr.rel (0) target = $region33
    $region32: #{vulnerability_final_forward.1} parent=1 // pred_region
      %69 = dma.done [#allocation8], 128
    $region33: #{vulnerability_final_forward.1} parent=1 // pred_fallthru
      _
    %v71 = vld [vmem:[#allocation2] sm:$0xff]
    %v72 = vld [vmem:[#allocation2 + $0x8] sm:$0xff]
    %v73 = vld [vmem:[#allocation2 + $0x10] sm:$0xff]
    %v74 = vld [vmem:[#allocation2 + $0x18] sm:$0xff]
    %v75 = vld [vmem:[#allocation2 + $0x20] sm:$0xff]
    %v76 = vld [vmem:[#allocation2 + $0x28] sm:$0xff]
    %v77 = vld [vmem:[#allocation2 + $0x30] sm:$0xff]
    %v78 = vld [vmem:[#allocation2 + $0x38] sm:$0xff]
    %v79 = vld [vmem:[#allocation2 + $0x40] sm:$0xff]
    %v80 = vld [vmem:[#allocation2 + $0x48] sm:$0xff]
    %v81 = vld [vmem:[#allocation2 + $0x50] sm:$0xff]
    %v82 = vld [vmem:[#allocation2 + $0x58] sm:$0xff]
    %v83 = vld [vmem:[#allocation2 + $0x60] sm:$0xff]
    %v84 = vld [vmem:[#allocation2 + $0x68] sm:$0xff]
    %v85 = vld [vmem:[#allocation2 + $0x70] sm:$0xff]
    %v86 = vld [vmem:[#allocation2 + $0x78] sm:$0xff]
    %v87 = vld [vmem:[#allocation2 + $0x80] sm:$0xff]
    %v88 = vld [vmem:[#allocation2 + $0x88] sm:$0xff]
    %v89 = vld [vmem:[#allocation2 + $0x90] sm:$0xff]
    %v90 = vld [vmem:[#allocation2 + $0x98] sm:$0xff]
    %v91 = vld [vmem:[#allocation2 + $0xa0] sm:$0xff]
    %v92 = vld [vmem:[#allocation2 + $0xa8] sm:$0xff]
    %v93 = vld [vmem:[#allocation2 + $0xb0] sm:$0xff]
    %v94 = vld [vmem:[#allocation2 + $0xb8] sm:$0xff]
    %v95 = vld [vmem:[#allocation2 + $0xc0] sm:$0xff]
    %v96 = vld [vmem:[#allocation2 + $0xc8] sm:$0xff]
    %v97 = vld [vmem:[#allocation2 + $0xd0] sm:$0xff]
    %v98 = vld [vmem:[#allocation2 + $0xd8] sm:$0xff]
    %v99 = vld [vmem:[#allocation2 + $0xe0] sm:$0xff]
    %v100 = vld [vmem:[#allocation2 + $0xe8] sm:$0xff]
    %v101 = vld [vmem:[#allocation2 + $0xf0] sm:$0xff]
    %v102 = vld [vmem:[#allocation2 + $0xf8] sm:$0xff]
    %v103 = vld [vmem:[#allocation7] sm:$0xff]
    %v104 = vld [vmem:[#allocation4] sm:$0xf]
    %v105 = vld [vmem:[#allocation4 + $0x4] sm:$0xf]
    %v106 = vld [vmem:[#allocation4 + $0x8] sm:$0xf]
    %v107 = vld [vmem:[#allocation4 + $0xc] sm:$0xf]
    %v108 = vld [vmem:[#allocation4 + $0x10] sm:$0xf]
    %v109 = vld [vmem:[#allocation4 + $0x14] sm:$0xf]
    %v110 = vld [vmem:[#allocation4 + $0x18] sm:$0xf]
    %v111 = vld [vmem:[#allocation4 + $0x1c] sm:$0xf]
    %v112 = vld [vmem:[#allocation4 + $0x20] sm:$0xf]
    %v113 = vld [vmem:[#allocation4 + $0x24] sm:$0xf]
    %v114 = vld [vmem:[#allocation4 + $0x28] sm:$0xf]
    %v115 = vld [vmem:[#allocation4 + $0x2c] sm:$0xf]
    %v116 = vld [vmem:[#allocation4 + $0x30] sm:$0xf]
    %v117 = vld [vmem:[#allocation4 + $0x34] sm:$0xf]
    %v118 = vld [vmem:[#allocation4 + $0x38] sm:$0xf]
    %v119 = vld [vmem:[#allocation4 + $0x3c] sm:$0xf]
    %v120 = vld [vmem:[#allocation4 + $0x40] sm:$0xf]
    %v121 = vld [vmem:[#allocation4 + $0x44] sm:$0xf]
    %v122 = vld [vmem:[#allocation4 + $0x48] sm:$0xf]
    %v123 = vld [vmem:[#allocation4 + $0x4c] sm:$0xf]
    %v124 = vld [vmem:[#allocation4 + $0x50] sm:$0xf]
    %v125 = vld [vmem:[#allocation4 + $0x54] sm:$0xf]
    %v126 = vld [vmem:[#allocation4 + $0x58] sm:$0xf]
    %v127 = vld [vmem:[#allocation4 + $0x5c] sm:$0xf]
    %v128 = vld [vmem:[#allocation4 + $0x60] sm:$0xf]
    %v129 = vld [vmem:[#allocation4 + $0x64] sm:$0xf]
    %v130 = vld [vmem:[#allocation4 + $0x68] sm:$0xf]
    %v131 = vld [vmem:[#allocation4 + $0x6c] sm:$0xf]
    %v132 = vld [vmem:[#allocation4 + $0x70] sm:$0xf]
    %v133 = vld [vmem:[#allocation4 + $0x74] sm:$0xf]
    %v134 = vld [vmem:[#allocation4 + $0x78] sm:$0xf]
    %v135 = vld [vmem:[#allocation4 + $0x7c] sm:$0xf]
    %v136 = vld [vmem:[#allocation6] sm:$0xf]
    %v137 = vld [vmem:[#allocation6 + $0x4] sm:$0xf]
    %v138 = vld [vmem:[#allocation6 + $0x8] sm:$0xf]
    %v139 = vld [vmem:[#allocation6 + $0xc] sm:$0xf]
    %v140 = vld [vmem:[#allocation6 + $0x10] sm:$0xf]
    %v141 = vld [vmem:[#allocation6 + $0x14] sm:$0xf]
    %v142 = vld [vmem:[#allocation6 + $0x18] sm:$0xf]
    %v143 = vld [vmem:[#allocation6 + $0x1c] sm:$0xf]
    %v144 = vld [vmem:[#allocation6 + $0x20] sm:$0xf]
    %v145 = vld [vmem:[#allocation6 + $0x24] sm:$0xf]
    %v146 = vld [vmem:[#allocation6 + $0x28] sm:$0xf]
    %v147 = vld [vmem:[#allocation6 + $0x2c] sm:$0xf]
    %v148 = vld [vmem:[#allocation6 + $0x30] sm:$0xf]
    %v149 = vld [vmem:[#allocation6 + $0x34] sm:$0xf]
    %v150 = vld [vmem:[#allocation6 + $0x38] sm:$0xf]
    %v151 = vld [vmem:[#allocation6 + $0x3c] sm:$0xf]
    %v184 = vunpack.c.l.b16 %v104
    %v185 = vunpack.c.l.b16 %v105
    %v186 = vunpack.c.l.b16 %v106
    %v187 = vunpack.c.l.b16 %v107
    %v188 = vunpack.c.l.b16 %v108
    %v189 = vunpack.c.l.b16 %v109
    %v190 = vunpack.c.l.b16 %v110
    %v191 = vunpack.c.l.b16 %v111
    %v192 = vunpack.c.l.b16 %v112
    %v193 = vunpack.c.l.b16 %v113
    %v194 = vunpack.c.l.b16 %v114
    %v195 = vunpack.c.l.b16 %v115
    %v196 = vunpack.c.l.b16 %v116
    %v197 = vunpack.c.l.b16 %v117
    %v198 = vunpack.c.l.b16 %v118
    %v199 = vunpack.c.l.b16 %v119
    %v200 = vunpack.c.l.b16 %v120
    %v201 = vunpack.c.l.b16 %v121
    %v202 = vunpack.c.l.b16 %v122
    %v203 = vunpack.c.l.b16 %v123
    %v204 = vunpack.c.l.b16 %v124
    %v205 = vunpack.c.l.b16 %v125
    %v206 = vunpack.c.l.b16 %v126
    %v207 = vunpack.c.l.b16 %v127
    %v208 = vunpack.c.l.b16 %v128
    %v209 = vunpack.c.l.b16 %v129
    %v210 = vunpack.c.l.b16 %v130
    %v211 = vunpack.c.l.b16 %v131
    %v212 = vunpack.c.l.b16 %v132
    %v213 = vunpack.c.l.b16 %v133
    %v214 = vunpack.c.l.b16 %v134
    %v215 = vunpack.c.l.b16 %v135
    %v216 = vpack.c.b16 %v185, %v184
    %v217 = vpack.c.b16 %v187, %v186
    %v218 = vpack.c.b16 %v189, %v188
    %v219 = vpack.c.b16 %v191, %v190
    %v220 = vpack.c.b16 %v193, %v192
    %v221 = vpack.c.b16 %v195, %v194
    %v222 = vpack.c.b16 %v197, %v196
    %v223 = vpack.c.b16 %v199, %v198
    %v224 = vpack.c.b16 %v201, %v200
    %v225 = vpack.c.b16 %v203, %v202
    %v226 = vpack.c.b16 %v205, %v204
    %v227 = vpack.c.b16 %v207, %v206
    %v228 = vpack.c.b16 %v209, %v208
    %v229 = vpack.c.b16 %v211, %v210
    %v230 = vpack.c.b16 %v213, %v212
    %v231 = vpack.c.b16 %v215, %v214
    %v264 = vunpack.c.l.b16 %v136
    %v265 = vunpack.c.l.b16 %v137
    %v266 = vunpack.c.l.b16 %v138
    %v267 = vunpack.c.l.b16 %v139
    %v268 = vunpack.c.l.b16 %v140
    %v269 = vunpack.c.l.b16 %v141
    %v270 = vunpack.c.l.b16 %v142
    %v271 = vunpack.c.l.b16 %v143
    %v272 = vunpack.c.l.b16 %v144
    %v273 = vunpack.c.l.b16 %v145
    %v274 = vunpack.c.l.b16 %v146
    %v275 = vunpack.c.l.b16 %v147
    %v276 = vunpack.c.l.b16 %v148
    %v277 = vunpack.c.l.b16 %v149
    %v278 = vunpack.c.l.b16 %v150
    %v279 = vunpack.c.l.b16 %v151
    %v280 = vpack.c.b16 %v265, %v264
    %v281 = vpack.c.b16 %v267, %v266
    %v282 = vpack.c.b16 %v269, %v268
    %v283 = vpack.c.b16 %v271, %v270
    %v284 = vpack.c.b16 %v273, %v272
    %v285 = vpack.c.b16 %v275, %v274
    %v286 = vpack.c.b16 %v277, %v276
    %v287 = vpack.c.b16 %v279, %v278
    %296 = vmatprep.subr.bf16.mxu0 0
    %297 = vmatpush1.bf16.msra.mxu0 %v287
    %298 = vmatprep.subr.bf16.mxu0 0
    %299 = vmatpush1.bf16.msra.mxu0 %v286
    %300 = vmatprep.subr.bf16.mxu0 0
    %301 = vmatpush1.bf16.msra.mxu0 %v285
    %302 = vmatprep.subr.bf16.mxu0 0
    %303 = vmatpush1.bf16.msra.mxu0 %v284
    %304 = vmatprep.subr.bf16.mxu0 0
    %305 = vmatpush1.bf16.msra.mxu0 %v283
    %306 = vmatprep.subr.bf16.mxu0 0
    %307 = vmatpush1.bf16.msra.mxu0 %v282
    %308 = vmatprep.subr.bf16.mxu0 0
    %309 = vmatpush1.bf16.msra.mxu0 %v281
    %310 = vmatprep.subr.bf16.mxu0 0
    %311 = vmatpush1.bf16.msra.mxu0 %v280
    %312 = vmatprep.subr.bf16.mxu0 0
    %313 = vmatpush2.bf16.msra.mxu0 0
    %314 = vmatprep.subr.bf16.mxu0 0
    %315 = vmatpush2.bf16.msra.mxu0 0
    %316 = vmatprep.subr.bf16.mxu0 0
    %317 = vmatpush2.bf16.msra.mxu0 0
    %318 = vmatprep.subr.bf16.mxu0 0
    %319 = vmatpush2.bf16.msra.mxu0 0
    %320 = vmatprep.subr.bf16.mxu0 0
    %321 = vmatpush2.bf16.msra.mxu0 0
    %322 = vmatprep.subr.bf16.mxu0 0
    %323 = vmatpush2.bf16.msra.mxu0 0
    %324 = vmatprep.subr.bf16.mxu0 0
    %325 = vmatpush2.bf16.msra.mxu0 0
    %326 = vmatprep.subr.bf16.mxu0 0
    %327 = vmatpush2.bf16.msra.mxu0 0
    %328 = vmatprep.mubr.bf16.mxu0 0
    %329 = vmatmul.mubr.bf16.gmra.mxu0 %v216
    %v330 = vpop.f32.mrf.mxu0
    %v331 = vadd.f32 0.0, %v330
    %v332 = vpop.f32.mrf.mxu0
    %v333 = vpop.f32.mrf.mxu0
    %v334 = vadd.f32 0.0, %v333
    %v335 = vpop.f32.mrf.mxu0
    %336 = vmatprep.mubr.bf16.mxu0 0
    %337 = vmatmul.mubr.bf16.gmra.mxu0 %v217
    %v338 = vpop.f32.mrf.mxu0
    %v339 = vadd.f32 0.0, %v338
    %v340 = vpop.f32.mrf.mxu0
    %v341 = vpop.f32.mrf.mxu0
    %v342 = vadd.f32 0.0, %v341
    %v343 = vpop.f32.mrf.mxu0
    %344 = vmatprep.mubr.bf16.mxu0 0
    %345 = vmatmul.mubr.bf16.gmra.mxu0 %v218
    %v346 = vpop.f32.mrf.mxu0
    %v347 = vadd.f32 0.0, %v346
    %v348 = vpop.f32.mrf.mxu0
    %v349 = vpop.f32.mrf.mxu0
    %v350 = vadd.f32 0.0, %v349
    %v351 = vpop.f32.mrf.mxu0
    %352 = vmatprep.mubr.bf16.mxu0 0
    %353 = vmatmul.mubr.bf16.gmra.mxu0 %v219
    %v354 = vpop.f32.mrf.mxu0
    %v355 = vadd.f32 0.0, %v354
    %v356 = vpop.f32.mrf.mxu0
    %v357 = vpop.f32.mrf.mxu0
    %v358 = vadd.f32 0.0, %v357
    %v359 = vpop.f32.mrf.mxu0
    %360 = vmatprep.mubr.bf16.mxu0 0
    %361 = vmatmul.mubr.bf16.gmra.mxu0 %v220
    %v362 = vpop.f32.mrf.mxu0
    %v363 = vadd.f32 0.0, %v362
    %v364 = vpop.f32.mrf.mxu0
    %v365 = vpop.f32.mrf.mxu0
    %v366 = vadd.f32 0.0, %v365
    %v367 = vpop.f32.mrf.mxu0
    %368 = vmatprep.mubr.bf16.mxu0 0
    %369 = vmatmul.mubr.bf16.gmra.mxu0 %v221
    %v370 = vpop.f32.mrf.mxu0
    %v371 = vadd.f32 0.0, %v370
    %v372 = vpop.f32.mrf.mxu0
    %v373 = vpop.f32.mrf.mxu0
    %v374 = vadd.f32 0.0, %v373
    %v375 = vpop.f32.mrf.mxu0
    %376 = vmatprep.mubr.bf16.mxu0 0
    %377 = vmatmul.mubr.bf16.gmra.mxu0 %v222
    %v378 = vpop.f32.mrf.mxu0
    %v379 = vadd.f32 0.0, %v378
    %v380 = vpop.f32.mrf.mxu0
    %v381 = vpop.f32.mrf.mxu0
    %v382 = vadd.f32 0.0, %v381
    %v383 = vpop.f32.mrf.mxu0
    %384 = vmatprep.mubr.bf16.mxu0 0
    %385 = vmatmul.mubr.bf16.gmra.mxu0 %v223
    %v386 = vpop.f32.mrf.mxu0
    %v387 = vadd.f32 0.0, %v386
    %v388 = vpop.f32.mrf.mxu0
    %v389 = vpop.f32.mrf.mxu0
    %v390 = vadd.f32 0.0, %v389
    %v391 = vpop.f32.mrf.mxu0
    %392 = vmatprep.mubr.bf16.mxu0 0
    %393 = vmatmul.mubr.bf16.gmra.mxu0 %v224
    %v394 = vpop.f32.mrf.mxu0
    %v395 = vadd.f32 0.0, %v394
    %v396 = vpop.f32.mrf.mxu0
    %v397 = vpop.f32.mrf.mxu0
    %v398 = vadd.f32 0.0, %v397
    %v399 = vpop.f32.mrf.mxu0
    %400 = vmatprep.mubr.bf16.mxu0 0
    %401 = vmatmul.mubr.bf16.gmra.mxu0 %v225
    %v402 = vpop.f32.mrf.mxu0
    %v403 = vadd.f32 0.0, %v402
    %v404 = vpop.f32.mrf.mxu0
    %v405 = vpop.f32.mrf.mxu0
    %v406 = vadd.f32 0.0, %v405
    %v407 = vpop.f32.mrf.mxu0
    %408 = vmatprep.mubr.bf16.mxu0 0
    %409 = vmatmul.mubr.bf16.gmra.mxu0 %v226
    %v410 = vpop.f32.mrf.mxu0
    %v411 = vadd.f32 0.0, %v410
    %v412 = vpop.f32.mrf.mxu0
    %v413 = vpop.f32.mrf.mxu0
    %v414 = vadd.f32 0.0, %v413
    %v415 = vpop.f32.mrf.mxu0
    %416 = vmatprep.mubr.bf16.mxu0 0
    %417 = vmatmul.mubr.bf16.gmra.mxu0 %v227
    %v418 = vpop.f32.mrf.mxu0
    %v419 = vadd.f32 0.0, %v418
    %v420 = vpop.f32.mrf.mxu0
    %v421 = vpop.f32.mrf.mxu0
    %v422 = vadd.f32 0.0, %v421
    %v423 = vpop.f32.mrf.mxu0
    %424 = vmatprep.mubr.bf16.mxu0 0
    %425 = vmatmul.mubr.bf16.gmra.mxu0 %v228
    %v426 = vpop.f32.mrf.mxu0
    %v427 = vadd.f32 0.0, %v426
    %v428 = vpop.f32.mrf.mxu0
    %v429 = vpop.f32.mrf.mxu0
    %v430 = vadd.f32 0.0, %v429
    %v431 = vpop.f32.mrf.mxu0
    %432 = vmatprep.mubr.bf16.mxu0 0
    %433 = vmatmul.mubr.bf16.gmra.mxu0 %v229
    %v434 = vpop.f32.mrf.mxu0
    %v435 = vadd.f32 0.0, %v434
    %v436 = vpop.f32.mrf.mxu0
    %v437 = vpop.f32.mrf.mxu0
    %v438 = vadd.f32 0.0, %v437
    %v439 = vpop.f32.mrf.mxu0
    %440 = vmatprep.mubr.bf16.mxu0 0
    %441 = vmatmul.mubr.bf16.gmra.mxu0 %v230
    %v442 = vpop.f32.mrf.mxu0
    %v443 = vadd.f32 0.0, %v442
    %v444 = vpop.f32.mrf.mxu0
    %v445 = vpop.f32.mrf.mxu0
    %v446 = vadd.f32 0.0, %v445
    %v447 = vpop.f32.mrf.mxu0
    %448 = vmatprep.mubr.bf16.mxu0 0
    %449 = vmatmul.mubr.bf16.gmra.mxu0 %v231
    %v450 = vpop.f32.mrf.mxu0
    %v451 = vadd.f32 0.0, %v450
    %v452 = vpop.f32.mrf.mxu0
    %v453 = vpop.f32.mrf.mxu0
    %v454 = vadd.f32 0.0, %v453
    %v455 = vpop.f32.mrf.mxu0
    %456 = vdwg.mxu0
    %v457 = vpack.c.bf16 %v334, %v331
    %v458 = vpack.c.bf16 %v342, %v339
    %v459 = vpack.c.bf16 %v350, %v347
    %v460 = vpack.c.bf16 %v358, %v355
    %v461 = vpack.c.bf16 %v366, %v363
    %v462 = vpack.c.bf16 %v374, %v371
    %v463 = vpack.c.bf16 %v382, %v379
    %v464 = vpack.c.bf16 %v390, %v387
    %v465 = vpack.c.bf16 %v398, %v395
    %v466 = vpack.c.bf16 %v406, %v403
    %v467 = vpack.c.bf16 %v414, %v411
    %v468 = vpack.c.bf16 %v422, %v419
    %v469 = vpack.c.bf16 %v430, %v427
    %v470 = vpack.c.bf16 %v438, %v435
    %v471 = vpack.c.bf16 %v446, %v443
    %v472 = vpack.c.bf16 %v454, %v451
    %v473 = vlaneseq
    %v474 = vshrl.u32 %v473, 7
    %v475 = vsub.s32 0, %v474
    %v476 = vrot.slane %v103, %v475
    %v509 = vunpack.c.l.b16 %v71
    %v510 = vunpack.c.h.b16 %v71
    %v511 = vunpack.c.l.b16 %v72
    %v512 = vunpack.c.h.b16 %v72
    %v513 = vunpack.c.l.b16 %v73
    %v514 = vunpack.c.h.b16 %v73
    %v515 = vunpack.c.l.b16 %v74
    %v516 = vunpack.c.h.b16 %v74
    %v517 = vunpack.c.l.b16 %v75
    %v518 = vunpack.c.h.b16 %v75
    %v519 = vunpack.c.l.b16 %v76
    %v520 = vunpack.c.h.b16 %v76
    %v521 = vunpack.c.l.b16 %v77
    %v522 = vunpack.c.h.b16 %v77
    %v523 = vunpack.c.l.b16 %v78
    %v524 = vunpack.c.h.b16 %v78
    %v525 = vunpack.c.l.b16 %v79
    %v526 = vunpack.c.h.b16 %v79
    %v527 = vunpack.c.l.b16 %v80
    %v528 = vunpack.c.h.b16 %v80
    %v529 = vunpack.c.l.b16 %v81
    %v530 = vunpack.c.h.b16 %v81
    %v531 = vunpack.c.l.b16 %v82
    %v532 = vunpack.c.h.b16 %v82
    %v533 = vunpack.c.l.b16 %v83
    %v534 = vunpack.c.h.b16 %v83
    %v535 = vunpack.c.l.b16 %v84
    %v536 = vunpack.c.h.b16 %v84
    %v537 = vunpack.c.l.b16 %v85
    %v538 = vunpack.c.h.b16 %v85
    %v539 = vunpack.c.l.b16 %v86
    %v540 = vunpack.c.h.b16 %v86
    %v541 = vunpack.c.l.b16 %v87
    %v542 = vunpack.c.h.b16 %v87
    %v543 = vunpack.c.l.b16 %v88
    %v544 = vunpack.c.h.b16 %v88
    %v545 = vunpack.c.l.b16 %v89
    %v546 = vunpack.c.h.b16 %v89
    %v547 = vunpack.c.l.b16 %v90
    %v548 = vunpack.c.h.b16 %v90
    %v549 = vunpack.c.l.b16 %v91
    %v550 = vunpack.c.h.b16 %v91
    %v551 = vunpack.c.l.b16 %v92
    %v552 = vunpack.c.h.b16 %v92
    %v553 = vunpack.c.l.b16 %v93
    %v554 = vunpack.c.h.b16 %v93
    %v555 = vunpack.c.l.b16 %v94
    %v556 = vunpack.c.h.b16 %v94
    %v557 = vunpack.c.l.b16 %v95
    %v558 = vunpack.c.h.b16 %v95
    %v559 = vunpack.c.l.b16 %v96
    %v560 = vunpack.c.h.b16 %v96
    %v561 = vunpack.c.l.b16 %v97
    %v562 = vunpack.c.h.b16 %v97
    %v563 = vunpack.c.l.b16 %v98
    %v564 = vunpack.c.h.b16 %v98
    %v565 = vunpack.c.l.b16 %v99
    %v566 = vunpack.c.h.b16 %v99
    %v567 = vunpack.c.l.b16 %v100
    %v568 = vunpack.c.h.b16 %v100
    %v569 = vunpack.c.l.b16 %v101
    %v570 = vunpack.c.h.b16 %v101
    %v571 = vunpack.c.l.b16 %v102
    %v572 = vunpack.c.h.b16 %v102
    %v573 = vpack.c.b16 %v511, %v509
    %v574 = vpack.c.b16 %v512, %v510
    %v575 = vpack.c.b16 %v515, %v513
    %v576 = vpack.c.b16 %v516, %v514
    %v577 = vpack.c.b16 %v519, %v517
    %v578 = vpack.c.b16 %v520, %v518
    %v579 = vpack.c.b16 %v523, %v521
    %v580 = vpack.c.b16 %v524, %v522
    %v581 = vpack.c.b16 %v527, %v525
    %v582 = vpack.c.b16 %v528, %v526
    %v583 = vpack.c.b16 %v531, %v529
    %v584 = vpack.c.b16 %v532, %v530
    %v585 = vpack.c.b16 %v535, %v533
    %v586 = vpack.c.b16 %v536, %v534
    %v587 = vpack.c.b16 %v539, %v537
    %v588 = vpack.c.b16 %v540, %v538
    %v589 = vpack.c.b16 %v543, %v541
    %v590 = vpack.c.b16 %v544, %v542
    %v591 = vpack.c.b16 %v547, %v545
    %v592 = vpack.c.b16 %v548, %v546
    %v593 = vpack.c.b16 %v551, %v549
    %v594 = vpack.c.b16 %v552, %v550
    %v595 = vpack.c.b16 %v555, %v553
    %v596 = vpack.c.b16 %v556, %v554
    %v597 = vpack.c.b16 %v559, %v557
    %v598 = vpack.c.b16 %v560, %v558
    %v599 = vpack.c.b16 %v563, %v561
    %v600 = vpack.c.b16 %v564, %v562
    %v601 = vpack.c.b16 %v567, %v565
    %v602 = vpack.c.b16 %v568, %v566
    %v603 = vpack.c.b16 %v571, %v569
    %v604 = vpack.c.b16 %v572, %v570
    %637 = vmatprep.subr.bf16.mxu0 0
    %638 = vmatpush1.bf16.msra.mxu0 %v464
    %639 = vmatprep.subr.bf16.mxu0 0
    %640 = vmatpush1.bf16.msra.mxu0 %v463
    %641 = vmatprep.subr.bf16.mxu0 0
    %642 = vmatpush1.bf16.msra.mxu0 %v462
    %643 = vmatprep.subr.bf16.mxu0 0
    %644 = vmatpush1.bf16.msra.mxu0 %v461
    %645 = vmatprep.subr.bf16.mxu0 0
    %646 = vmatpush1.bf16.msra.mxu0 %v460
    %647 = vmatprep.subr.bf16.mxu0 0
    %648 = vmatpush1.bf16.msra.mxu0 %v459
    %649 = vmatprep.subr.bf16.mxu0 0
    %650 = vmatpush1.bf16.msra.mxu0 %v458
    %651 = vmatprep.subr.bf16.mxu0 0
    %652 = vmatpush1.bf16.msra.mxu0 %v457
    %653 = vmatprep.subr.bf16.mxu0 0
    %654 = vmatpush2.bf16.msra.mxu0 %v472
    %655 = vmatprep.subr.bf16.mxu0 0
    %656 = vmatpush2.bf16.msra.mxu0 %v471
    %657 = vmatprep.subr.bf16.mxu0 0
    %658 = vmatpush2.bf16.msra.mxu0 %v470
    %659 = vmatprep.subr.bf16.mxu0 0
    %660 = vmatpush2.bf16.msra.mxu0 %v469
    %661 = vmatprep.subr.bf16.mxu0 0
    %662 = vmatpush2.bf16.msra.mxu0 %v468
    %663 = vmatprep.subr.bf16.mxu0 0
    %664 = vmatpush2.bf16.msra.mxu0 %v467
    %665 = vmatprep.subr.bf16.mxu0 0
    %666 = vmatpush2.bf16.msra.mxu0 %v466
    %667 = vmatprep.subr.bf16.mxu0 0
    %668 = vmatpush2.bf16.msra.mxu0 %v465
    %669 = vmatprep.mubr.bf16.mxu0 %v574
    %670 = vmatmul.mubr.bf16.gmra.mxu0 %v573
    %v671 = vpop.f32.mrf.mxu0
    %v672 = vadd.f32 %v476, %v671
    %v673 = vpop.f32.mrf.mxu0
    %v674 = vpop.f32.mrf.mxu0
    %v675 = vadd.f32 %v476, %v674
    %v676 = vpop.f32.mrf.mxu0
    %677 = vmatprep.mubr.bf16.mxu0 %v576
    %678 = vmatmul.mubr.bf16.gmra.mxu0 %v575
    %v679 = vpop.f32.mrf.mxu0
    %v680 = vadd.f32 %v476, %v679
    %v681 = vpop.f32.mrf.mxu0
    %v682 = vpop.f32.mrf.mxu0
    %v683 = vadd.f32 %v476, %v682
    %v684 = vpop.f32.mrf.mxu0
    %685 = vmatprep.mubr.bf16.mxu0 %v578
    %686 = vmatmul.mubr.bf16.gmra.mxu0 %v577
    %v687 = vpop.f32.mrf.mxu0
    %v688 = vadd.f32 %v476, %v687
    %v689 = vpop.f32.mrf.mxu0
    %v690 = vpop.f32.mrf.mxu0
    %v691 = vadd.f32 %v476, %v690
    %v692 = vpop.f32.mrf.mxu0
    %693 = vmatprep.mubr.bf16.mxu0 %v580
    %694 = vmatmul.mubr.bf16.gmra.mxu0 %v579
    %v695 = vpop.f32.mrf.mxu0
    %v696 = vadd.f32 %v476, %v695
    %v697 = vpop.f32.mrf.mxu0
    %v698 = vpop.f32.mrf.mxu0
    %v699 = vadd.f32 %v476, %v698
    %v700 = vpop.f32.mrf.mxu0
    %701 = vmatprep.mubr.bf16.mxu0 %v582
    %702 = vmatmul.mubr.bf16.gmra.mxu0 %v581
    %v703 = vpop.f32.mrf.mxu0
    %v704 = vadd.f32 %v476, %v703
    %v705 = vpop.f32.mrf.mxu0
    %v706 = vpop.f32.mrf.mxu0
    %v707 = vadd.f32 %v476, %v706
    %v708 = vpop.f32.mrf.mxu0
    %709 = vmatprep.mubr.bf16.mxu0 %v584
    %710 = vmatmul.mubr.bf16.gmra.mxu0 %v583
    %v711 = vpop.f32.mrf.mxu0
    %v712 = vadd.f32 %v476, %v711
    %v713 = vpop.f32.mrf.mxu0
    %v714 = vpop.f32.mrf.mxu0
    %v715 = vadd.f32 %v476, %v714
    %v716 = vpop.f32.mrf.mxu0
    %717 = vmatprep.mubr.bf16.mxu0 %v586
    %718 = vmatmul.mubr.bf16.gmra.mxu0 %v585
    %v719 = vpop.f32.mrf.mxu0
    %v720 = vadd.f32 %v476, %v719
    %v721 = vpop.f32.mrf.mxu0
    %v722 = vpop.f32.mrf.mxu0
    %v723 = vadd.f32 %v476, %v722
    %v724 = vpop.f32.mrf.mxu0
    %725 = vmatprep.mubr.bf16.mxu0 %v588
    %726 = vmatmul.mubr.bf16.gmra.mxu0 %v587
    %v727 = vpop.f32.mrf.mxu0
    %v728 = vadd.f32 %v476, %v727
    %v729 = vpop.f32.mrf.mxu0
    %v730 = vpop.f32.mrf.mxu0
    %v731 = vadd.f32 %v476, %v730
    %v732 = vpop.f32.mrf.mxu0
    %733 = vmatprep.mubr.bf16.mxu0 %v590
    %734 = vmatmul.mubr.bf16.gmra.mxu0 %v589
    %v735 = vpop.f32.mrf.mxu0
    %v736 = vadd.f32 %v476, %v735
    %v737 = vpop.f32.mrf.mxu0
    %v738 = vpop.f32.mrf.mxu0
    %v739 = vadd.f32 %v476, %v738
    %v740 = vpop.f32.mrf.mxu0
    %741 = vmatprep.mubr.bf16.mxu0 %v592
    %742 = vmatmul.mubr.bf16.gmra.mxu0 %v591
    %v743 = vpop.f32.mrf.mxu0
    %v744 = vadd.f32 %v476, %v743
    %v745 = vpop.f32.mrf.mxu0
    %v746 = vpop.f32.mrf.mxu0
    %v747 = vadd.f32 %v476, %v746
    %v748 = vpop.f32.mrf.mxu0
    %749 = vmatprep.mubr.bf16.mxu0 %v594
    %750 = vmatmul.mubr.bf16.gmra.mxu0 %v593
    %v751 = vpop.f32.mrf.mxu0
    %v752 = vadd.f32 %v476, %v751
    %v753 = vpop.f32.mrf.mxu0
    %v754 = vpop.f32.mrf.mxu0
    %v755 = vadd.f32 %v476, %v754
    %v756 = vpop.f32.mrf.mxu0
    %757 = vmatprep.mubr.bf16.mxu0 %v596
    %758 = vmatmul.mubr.bf16.gmra.mxu0 %v595
    %v759 = vpop.f32.mrf.mxu0
    %v760 = vadd.f32 %v476, %v759
    %v761 = vpop.f32.mrf.mxu0
    %v762 = vpop.f32.mrf.mxu0
    %v763 = vadd.f32 %v476, %v762
    %v764 = vpop.f32.mrf.mxu0
    %765 = vmatprep.mubr.bf16.mxu0 %v598
    %766 = vmatmul.mubr.bf16.gmra.mxu0 %v597
    %v767 = vpop.f32.mrf.mxu0
    %v768 = vadd.f32 %v476, %v767
    %v769 = vpop.f32.mrf.mxu0
    %v770 = vpop.f32.mrf.mxu0
    %v771 = vadd.f32 %v476, %v770
    %v772 = vpop.f32.mrf.mxu0
    %773 = vmatprep.mubr.bf16.mxu0 %v600
    %774 = vmatmul.mubr.bf16.gmra.mxu0 %v599
    %v775 = vpop.f32.mrf.mxu0
    %v776 = vadd.f32 %v476, %v775
    %v777 = vpop.f32.mrf.mxu0
    %v778 = vpop.f32.mrf.mxu0
    %v779 = vadd.f32 %v476, %v778
    %v780 = vpop.f32.mrf.mxu0
    %781 = vmatprep.mubr.bf16.mxu0 %v602
    %782 = vmatmul.mubr.bf16.gmra.mxu0 %v601
    %v783 = vpop.f32.mrf.mxu0
    %v784 = vadd.f32 %v476, %v783
    %v785 = vpop.f32.mrf.mxu0
    %v786 = vpop.f32.mrf.mxu0
    %v787 = vadd.f32 %v476, %v786
    %v788 = vpop.f32.mrf.mxu0
    %789 = vmatprep.mubr.bf16.mxu0 %v604
    %790 = vmatmul.mubr.bf16.gmra.mxu0 %v603
    %v791 = vpop.f32.mrf.mxu0
    %v792 = vadd.f32 %v476, %v791
    %v793 = vpop.f32.mrf.mxu0
    %v794 = vpop.f32.mrf.mxu0
    %v795 = vadd.f32 %v476, %v794
    %v796 = vpop.f32.mrf.mxu0
    %797 = vdwg.mxu0
    %v798 = vmax.f32 %v672, 0.0
    %v799 = vmax.f32 %v675, 0.0
    %v800 = vmax.f32 %v680, 0.0
    %v801 = vmax.f32 %v683, 0.0
    %v802 = vmax.f32 %v688, 0.0
    %v803 = vmax.f32 %v691, 0.0
    %v804 = vmax.f32 %v696, 0.0
    %v805 = vmax.f32 %v699, 0.0
    %v806 = vmax.f32 %v704, 0.0
    %v807 = vmax.f32 %v707, 0.0
    %v808 = vmax.f32 %v712, 0.0
    %v809 = vmax.f32 %v715, 0.0
    %v810 = vmax.f32 %v720, 0.0
    %v811 = vmax.f32 %v723, 0.0
    %v812 = vmax.f32 %v728, 0.0
    %v813 = vmax.f32 %v731, 0.0
    %v814 = vmax.f32 %v736, 0.0
    %v815 = vmax.f32 %v739, 0.0
    %v816 = vmax.f32 %v744, 0.0
    %v817 = vmax.f32 %v747, 0.0
    %v818 = vmax.f32 %v752, 0.0
    %v819 = vmax.f32 %v755, 0.0
    %v820 = vmax.f32 %v760, 0.0
    %v821 = vmax.f32 %v763, 0.0
    %v822 = vmax.f32 %v768, 0.0
    %v823 = vmax.f32 %v771, 0.0
    %v824 = vmax.f32 %v776, 0.0
    %v825 = vmax.f32 %v779, 0.0
    %v826 = vmax.f32 %v784, 0.0
    %v827 = vmax.f32 %v787, 0.0
    %v828 = vmax.f32 %v792, 0.0
    %v829 = vmax.f32 %v795, 0.0
    %v830 = vpack.c.bf16 %v799, %v798
    %v831 = vpack.c.bf16 %v801, %v800
    %v832 = vpack.c.bf16 %v803, %v802
    %v833 = vpack.c.bf16 %v805, %v804
    %v834 = vpack.c.bf16 %v807, %v806
    %v835 = vpack.c.bf16 %v809, %v808
    %v836 = vpack.c.bf16 %v811, %v810
    %v837 = vpack.c.bf16 %v813, %v812
    %v838 = vpack.c.bf16 %v815, %v814
    %v839 = vpack.c.bf16 %v817, %v816
    %v840 = vpack.c.bf16 %v819, %v818
    %v841 = vpack.c.bf16 %v821, %v820
    %v842 = vpack.c.bf16 %v823, %v822
    %v843 = vpack.c.bf16 %v825, %v824
    %v844 = vpack.c.bf16 %v827, %v826
    %v845 = vpack.c.bf16 %v829, %v828
    %s846 = scalar_lea.vmem [#allocation6], 64
    %v847 = vld [vmem:[%s846] sm:$0xf]
    %v848 = vld [vmem:[%s846 + $0x4] sm:$0xf]
    %v849 = vld [vmem:[%s846 + $0x8] sm:$0xf]
    %v850 = vld [vmem:[%s846 + $0xc] sm:$0xf]
    %v851 = vld [vmem:[%s846 + $0x10] sm:$0xf]
    %v852 = vld [vmem:[%s846 + $0x14] sm:$0xf]
    %v853 = vld [vmem:[%s846 + $0x18] sm:$0xf]
    %v854 = vld [vmem:[%s846 + $0x1c] sm:$0xf]
    %v855 = vld [vmem:[%s846 + $0x20] sm:$0xf]
    %v856 = vld [vmem:[%s846 + $0x24] sm:$0xf]
    %v857 = vld [vmem:[%s846 + $0x28] sm:$0xf]
    %v858 = vld [vmem:[%s846 + $0x2c] sm:$0xf]
    %v859 = vld [vmem:[%s846 + $0x30] sm:$0xf]
    %v860 = vld [vmem:[%s846 + $0x34] sm:$0xf]
    %v861 = vld [vmem:[%s846 + $0x38] sm:$0xf]
    %v862 = vld [vmem:[%s846 + $0x3c] sm:$0xf]
    %v879 = vunpack.c.l.b16 %v847
    %v880 = vunpack.c.l.b16 %v848
    %v881 = vunpack.c.l.b16 %v849
    %v882 = vunpack.c.l.b16 %v850
    %v883 = vunpack.c.l.b16 %v851
    %v884 = vunpack.c.l.b16 %v852
    %v885 = vunpack.c.l.b16 %v853
    %v886 = vunpack.c.l.b16 %v854
    %v887 = vunpack.c.l.b16 %v855
    %v888 = vunpack.c.l.b16 %v856
    %v889 = vunpack.c.l.b16 %v857
    %v890 = vunpack.c.l.b16 %v858
    %v891 = vunpack.c.l.b16 %v859
    %v892 = vunpack.c.l.b16 %v860
    %v893 = vunpack.c.l.b16 %v861
    %v894 = vunpack.c.l.b16 %v862
    %v895 = vpack.c.b16 %v880, %v879
    %v896 = vpack.c.b16 %v882, %v881
    %v897 = vpack.c.b16 %v884, %v883
    %v898 = vpack.c.b16 %v886, %v885
    %v899 = vpack.c.b16 %v888, %v887
    %v900 = vpack.c.b16 %v890, %v889
    %v901 = vpack.c.b16 %v892, %v891
    %v902 = vpack.c.b16 %v894, %v893
    %911 = vmatprep.subr.bf16.mxu0 0
    %912 = vmatpush1.bf16.msra.mxu0 %v902
    %913 = vmatprep.subr.bf16.mxu0 0
    %914 = vmatpush1.bf16.msra.mxu0 %v901
    %915 = vmatprep.subr.bf16.mxu0 0
    %916 = vmatpush1.bf16.msra.mxu0 %v900
    %917 = vmatprep.subr.bf16.mxu0 0
    %918 = vmatpush1.bf16.msra.mxu0 %v899
    %919 = vmatprep.subr.bf16.mxu0 0
    %920 = vmatpush1.bf16.msra.mxu0 %v898
    %921 = vmatprep.subr.bf16.mxu0 0
    %922 = vmatpush1.bf16.msra.mxu0 %v897
    %923 = vmatprep.subr.bf16.mxu0 0
    %924 = vmatpush1.bf16.msra.mxu0 %v896
    %925 = vmatprep.subr.bf16.mxu0 0
    %926 = vmatpush1.bf16.msra.mxu0 %v895
    %927 = vmatprep.subr.bf16.mxu0 0
    %928 = vmatpush2.bf16.msra.mxu0 0
    %929 = vmatprep.subr.bf16.mxu0 0
    %930 = vmatpush2.bf16.msra.mxu0 0
    %931 = vmatprep.subr.bf16.mxu0 0
    %932 = vmatpush2.bf16.msra.mxu0 0
    %933 = vmatprep.subr.bf16.mxu0 0
    %934 = vmatpush2.bf16.msra.mxu0 0
    %935 = vmatprep.subr.bf16.mxu0 0
    %936 = vmatpush2.bf16.msra.mxu0 0
    %937 = vmatprep.subr.bf16.mxu0 0
    %938 = vmatpush2.bf16.msra.mxu0 0
    %939 = vmatprep.subr.bf16.mxu0 0
    %940 = vmatpush2.bf16.msra.mxu0 0
    %941 = vmatprep.subr.bf16.mxu0 0
    %942 = vmatpush2.bf16.msra.mxu0 0
    %943 = vmatprep.mubr.bf16.mxu0 0
    %944 = vmatmul.mubr.bf16.gmra.mxu0 %v830
    %v945 = vpop.f32.mrf.mxu0
    %v946 = vadd.f32 0.0, %v945
    %v947 = vpop.f32.mrf.mxu0
    %v948 = vpop.f32.mrf.mxu0
    %v949 = vadd.f32 0.0, %v948
    %v950 = vpop.f32.mrf.mxu0
    %951 = vmatprep.mubr.bf16.mxu0 0
    %952 = vmatmul.mubr.bf16.gmra.mxu0 %v831
    %v953 = vpop.f32.mrf.mxu0
    %v954 = vadd.f32 0.0, %v953
    %v955 = vpop.f32.mrf.mxu0
    %v956 = vpop.f32.mrf.mxu0
    %v957 = vadd.f32 0.0, %v956
    %v958 = vpop.f32.mrf.mxu0
    %959 = vmatprep.mubr.bf16.mxu0 0
    %960 = vmatmul.mubr.bf16.gmra.mxu0 %v832
    %v961 = vpop.f32.mrf.mxu0
    %v962 = vadd.f32 0.0, %v961
    %v963 = vpop.f32.mrf.mxu0
    %v964 = vpop.f32.mrf.mxu0
    %v965 = vadd.f32 0.0, %v964
    %v966 = vpop.f32.mrf.mxu0
    %967 = vmatprep.mubr.bf16.mxu0 0
    %968 = vmatmul.mubr.bf16.gmra.mxu0 %v833
    %v969 = vpop.f32.mrf.mxu0
    %v970 = vadd.f32 0.0, %v969
    %v971 = vpop.f32.mrf.mxu0
    %v972 = vpop.f32.mrf.mxu0
    %v973 = vadd.f32 0.0, %v972
    %v974 = vpop.f32.mrf.mxu0
    %975 = vmatprep.mubr.bf16.mxu0 0
    %976 = vmatmul.mubr.bf16.gmra.mxu0 %v834
    %v977 = vpop.f32.mrf.mxu0
    %v978 = vadd.f32 0.0, %v977
    %v979 = vpop.f32.mrf.mxu0
    %v980 = vpop.f32.mrf.mxu0
    %v981 = vadd.f32 0.0, %v980
    %v982 = vpop.f32.mrf.mxu0
    %983 = vmatprep.mubr.bf16.mxu0 0
    %984 = vmatmul.mubr.bf16.gmra.mxu0 %v835
    %v985 = vpop.f32.mrf.mxu0
    %v986 = vadd.f32 0.0, %v985
    %v987 = vpop.f32.mrf.mxu0
    %v988 = vpop.f32.mrf.mxu0
    %v989 = vadd.f32 0.0, %v988
    %v990 = vpop.f32.mrf.mxu0
    %991 = vmatprep.mubr.bf16.mxu0 0
    %992 = vmatmul.mubr.bf16.gmra.mxu0 %v836
    %v993 = vpop.f32.mrf.mxu0
    %v994 = vadd.f32 0.0, %v993
    %v995 = vpop.f32.mrf.mxu0
    %v996 = vpop.f32.mrf.mxu0
    %v997 = vadd.f32 0.0, %v996
    %v998 = vpop.f32.mrf.mxu0
    %999 = vmatprep.mubr.bf16.mxu0 0
    %1000 = vmatmul.mubr.bf16.gmra.mxu0 %v837
    %v1001 = vpop.f32.mrf.mxu0
    %v1002 = vadd.f32 0.0, %v1001
    %v1003 = vpop.f32.mrf.mxu0
    %v1004 = vpop.f32.mrf.mxu0
    %v1005 = vadd.f32 0.0, %v1004
    %v1006 = vpop.f32.mrf.mxu0
    %1007 = vmatprep.mubr.bf16.mxu0 0
    %1008 = vmatmul.mubr.bf16.gmra.mxu0 %v838
    %v1009 = vpop.f32.mrf.mxu0
    %v1010 = vadd.f32 0.0, %v1009
    %v1011 = vpop.f32.mrf.mxu0
    %v1012 = vpop.f32.mrf.mxu0
    %v1013 = vadd.f32 0.0, %v1012
    %v1014 = vpop.f32.mrf.mxu0
    %1015 = vmatprep.mubr.bf16.mxu0 0
    %1016 = vmatmul.mubr.bf16.gmra.mxu0 %v839
    %v1017 = vpop.f32.mrf.mxu0
    %v1018 = vadd.f32 0.0, %v1017
    %v1019 = vpop.f32.mrf.mxu0
    %v1020 = vpop.f32.mrf.mxu0
    %v1021 = vadd.f32 0.0, %v1020
    %v1022 = vpop.f32.mrf.mxu0
    %1023 = vmatprep.mubr.bf16.mxu0 0
    %1024 = vmatmul.mubr.bf16.gmra.mxu0 %v840
    %v1025 = vpop.f32.mrf.mxu0
    %v1026 = vadd.f32 0.0, %v1025
    %v1027 = vpop.f32.mrf.mxu0
    %v1028 = vpop.f32.mrf.mxu0
    %v1029 = vadd.f32 0.0, %v1028
    %v1030 = vpop.f32.mrf.mxu0
    %1031 = vmatprep.mubr.bf16.mxu0 0
    %1032 = vmatmul.mubr.bf16.gmra.mxu0 %v841
    %v1033 = vpop.f32.mrf.mxu0
    %v1034 = vadd.f32 0.0, %v1033
    %v1035 = vpop.f32.mrf.mxu0
    %v1036 = vpop.f32.mrf.mxu0
    %v1037 = vadd.f32 0.0, %v1036
    %v1038 = vpop.f32.mrf.mxu0
    %1039 = vmatprep.mubr.bf16.mxu0 0
    %1040 = vmatmul.mubr.bf16.gmra.mxu0 %v842
    %v1041 = vpop.f32.mrf.mxu0
    %v1042 = vadd.f32 0.0, %v1041
    %v1043 = vpop.f32.mrf.mxu0
    %v1044 = vpop.f32.mrf.mxu0
    %v1045 = vadd.f32 0.0, %v1044
    %v1046 = vpop.f32.mrf.mxu0
    %1047 = vmatprep.mubr.bf16.mxu0 0
    %1048 = vmatmul.mubr.bf16.gmra.mxu0 %v843
    %v1049 = vpop.f32.mrf.mxu0
    %v1050 = vadd.f32 0.0, %v1049
    %v1051 = vpop.f32.mrf.mxu0
    %v1052 = vpop.f32.mrf.mxu0
    %v1053 = vadd.f32 0.0, %v1052
    %v1054 = vpop.f32.mrf.mxu0
    %1055 = vmatprep.mubr.bf16.mxu0 0
    %1056 = vmatmul.mubr.bf16.gmra.mxu0 %v844
    %v1057 = vpop.f32.mrf.mxu0
    %v1058 = vadd.f32 0.0, %v1057
    %v1059 = vpop.f32.mrf.mxu0
    %v1060 = vpop.f32.mrf.mxu0
    %v1061 = vadd.f32 0.0, %v1060
    %v1062 = vpop.f32.mrf.mxu0
    %1063 = vmatprep.mubr.bf16.mxu0 0
    %1064 = vmatmul.mubr.bf16.gmra.mxu0 %v845
    %v1065 = vpop.f32.mrf.mxu0
    %v1066 = vadd.f32 0.0, %v1065
    %v1067 = vpop.f32.mrf.mxu0
    %v1068 = vpop.f32.mrf.mxu0
    %v1069 = vadd.f32 0.0, %v1068
    %v1070 = vpop.f32.mrf.mxu0
    %1071 = vdwg.mxu0
    %v1072 = vpack.c.bf16 %v949, %v946
    %v1073 = vpack.c.bf16 %v957, %v954
    %v1074 = vpack.c.bf16 %v965, %v962
    %v1075 = vpack.c.bf16 %v973, %v970
    %v1076 = vpack.c.bf16 %v981, %v978
    %v1077 = vpack.c.bf16 %v989, %v986
    %v1078 = vpack.c.bf16 %v997, %v994
    %v1079 = vpack.c.bf16 %v1005, %v1002
    %v1080 = vpack.c.bf16 %v1013, %v1010
    %v1081 = vpack.c.bf16 %v1021, %v1018
    %v1082 = vpack.c.bf16 %v1029, %v1026
    %v1083 = vpack.c.bf16 %v1037, %v1034
    %v1084 = vpack.c.bf16 %v1045, %v1042
    %v1085 = vpack.c.bf16 %v1053, %v1050
    %v1086 = vpack.c.bf16 %v1061, %v1058
    %v1087 = vpack.c.bf16 %v1069, %v1066
    %v1088 = vlaneseq
    %v1089 = vshrl.u32 %v1088, 7
    %v1090 = vsub.s32 1, %v1089
    %v1091 = vrot.slane %v103, %v1090
    %1092 = vmatprep.subr.bf16.mxu0 0
    %1093 = vmatpush1.bf16.msra.mxu0 %v1079
    %1094 = vmatprep.subr.bf16.mxu0 0
    %1095 = vmatpush1.bf16.msra.mxu0 %v1078
    %1096 = vmatprep.subr.bf16.mxu0 0
    %1097 = vmatpush1.bf16.msra.mxu0 %v1077
    %1098 = vmatprep.subr.bf16.mxu0 0
    %1099 = vmatpush1.bf16.msra.mxu0 %v1076
    %1100 = vmatprep.subr.bf16.mxu0 0
    %1101 = vmatpush1.bf16.msra.mxu0 %v1075
    %1102 = vmatprep.subr.bf16.mxu0 0
    %1103 = vmatpush1.bf16.msra.mxu0 %v1074
    %1104 = vmatprep.subr.bf16.mxu0 0
    %1105 = vmatpush1.bf16.msra.mxu0 %v1073
    %1106 = vmatprep.subr.bf16.mxu0 0
    %1107 = vmatpush1.bf16.msra.mxu0 %v1072
    %1108 = vmatprep.subr.bf16.mxu0 0
    %1109 = vmatpush2.bf16.msra.mxu0 %v1087
    %1110 = vmatprep.subr.bf16.mxu0 0
    %1111 = vmatpush2.bf16.msra.mxu0 %v1086
    %1112 = vmatprep.subr.bf16.mxu0 0
    %1113 = vmatpush2.bf16.msra.mxu0 %v1085
    %1114 = vmatprep.subr.bf16.mxu0 0
    %1115 = vmatpush2.bf16.msra.mxu0 %v1084
    %1116 = vmatprep.subr.bf16.mxu0 0
    %1117 = vmatpush2.bf16.msra.mxu0 %v1083
    %1118 = vmatprep.subr.bf16.mxu0 0
    %1119 = vmatpush2.bf16.msra.mxu0 %v1082
    %1120 = vmatprep.subr.bf16.mxu0 0
    %1121 = vmatpush2.bf16.msra.mxu0 %v1081
    %1122 = vmatprep.subr.bf16.mxu0 0
    %1123 = vmatpush2.bf16.msra.mxu0 %v1080
    %1124 = vmatprep.mubr.bf16.mxu0 %v574
    %1125 = vmatmul.mubr.bf16.gmra.mxu0 %v573
    %v1126 = vpop.f32.mrf.mxu0
    %v1127 = vadd.f32 %v1091, %v1126
    %v1128 = vpop.f32.mrf.mxu0
    %v1129 = vpop.f32.mrf.mxu0
    %v1130 = vadd.f32 %v1091, %v1129
    %v1131 = vpop.f32.mrf.mxu0
    %1132 = vmatprep.mubr.bf16.mxu0 %v576
    %1133 = vmatmul.mubr.bf16.gmra.mxu0 %v575
    %v1134 = vpop.f32.mrf.mxu0
    %v1135 = vadd.f32 %v1091, %v1134
    %v1136 = vpop.f32.mrf.mxu0
    %v1137 = vpop.f32.mrf.mxu0
    %v1138 = vadd.f32 %v1091, %v1137
    %v1139 = vpop.f32.mrf.mxu0
    %1140 = vmatprep.mubr.bf16.mxu0 %v578
    %1141 = vmatmul.mubr.bf16.gmra.mxu0 %v577
    %v1142 = vpop.f32.mrf.mxu0
    %v1143 = vadd.f32 %v1091, %v1142
    %v1144 = vpop.f32.mrf.mxu0
    %v1145 = vpop.f32.mrf.mxu0
    %v1146 = vadd.f32 %v1091, %v1145
    %v1147 = vpop.f32.mrf.mxu0
    %1148 = vmatprep.mubr.bf16.mxu0 %v580
    %1149 = vmatmul.mubr.bf16.gmra.mxu0 %v579
    %v1150 = vpop.f32.mrf.mxu0
    %v1151 = vadd.f32 %v1091, %v1150
    %v1152 = vpop.f32.mrf.mxu0
    %v1153 = vpop.f32.mrf.mxu0
    %v1154 = vadd.f32 %v1091, %v1153
    %v1155 = vpop.f32.mrf.mxu0
    %1156 = vmatprep.mubr.bf16.mxu0 %v582
    %1157 = vmatmul.mubr.bf16.gmra.mxu0 %v581
    %v1158 = vpop.f32.mrf.mxu0
    %v1159 = vadd.f32 %v1091, %v1158
    %v1160 = vpop.f32.mrf.mxu0
    %v1161 = vpop.f32.mrf.mxu0
    %v1162 = vadd.f32 %v1091, %v1161
    %v1163 = vpop.f32.mrf.mxu0
    %1164 = vmatprep.mubr.bf16.mxu0 %v584
    %1165 = vmatmul.mubr.bf16.gmra.mxu0 %v583
    %v1166 = vpop.f32.mrf.mxu0
    %v1167 = vadd.f32 %v1091, %v1166
    %v1168 = vpop.f32.mrf.mxu0
    %v1169 = vpop.f32.mrf.mxu0
    %v1170 = vadd.f32 %v1091, %v1169
    %v1171 = vpop.f32.mrf.mxu0
    %1172 = vmatprep.mubr.bf16.mxu0 %v586
    %1173 = vmatmul.mubr.bf16.gmra.mxu0 %v585
    %v1174 = vpop.f32.mrf.mxu0
    %v1175 = vadd.f32 %v1091, %v1174
    %v1176 = vpop.f32.mrf.mxu0
    %v1177 = vpop.f32.mrf.mxu0
    %v1178 = vadd.f32 %v1091, %v1177
    %v1179 = vpop.f32.mrf.mxu0
    %1180 = vmatprep.mubr.bf16.mxu0 %v588
    %1181 = vmatmul.mubr.bf16.gmra.mxu0 %v587
    %v1182 = vpop.f32.mrf.mxu0
    %v1183 = vadd.f32 %v1091, %v1182
    %v1184 = vpop.f32.mrf.mxu0
    %v1185 = vpop.f32.mrf.mxu0
    %v1186 = vadd.f32 %v1091, %v1185
    %v1187 = vpop.f32.mrf.mxu0
    %1188 = vmatprep.mubr.bf16.mxu0 %v590
    %1189 = vmatmul.mubr.bf16.gmra.mxu0 %v589
    %v1190 = vpop.f32.mrf.mxu0
    %v1191 = vadd.f32 %v1091, %v1190
    %v1192 = vpop.f32.mrf.mxu0
    %v1193 = vpop.f32.mrf.mxu0
    %v1194 = vadd.f32 %v1091, %v1193
    %v1195 = vpop.f32.mrf.mxu0
    %1196 = vmatprep.mubr.bf16.mxu0 %v592
    %1197 = vmatmul.mubr.bf16.gmra.mxu0 %v591
    %v1198 = vpop.f32.mrf.mxu0
    %v1199 = vadd.f32 %v1091, %v1198
    %v1200 = vpop.f32.mrf.mxu0
    %v1201 = vpop.f32.mrf.mxu0
    %v1202 = vadd.f32 %v1091, %v1201
    %v1203 = vpop.f32.mrf.mxu0
    %1204 = vmatprep.mubr.bf16.mxu0 %v594
    %1205 = vmatmul.mubr.bf16.gmra.mxu0 %v593
    %v1206 = vpop.f32.mrf.mxu0
    %v1207 = vadd.f32 %v1091, %v1206
    %v1208 = vpop.f32.mrf.mxu0
    %v1209 = vpop.f32.mrf.mxu0
    %v1210 = vadd.f32 %v1091, %v1209
    %v1211 = vpop.f32.mrf.mxu0
    %1212 = vmatprep.mubr.bf16.mxu0 %v596
    %1213 = vmatmul.mubr.bf16.gmra.mxu0 %v595
    %v1214 = vpop.f32.mrf.mxu0
    %v1215 = vadd.f32 %v1091, %v1214
    %v1216 = vpop.f32.mrf.mxu0
    %v1217 = vpop.f32.mrf.mxu0
    %v1218 = vadd.f32 %v1091, %v1217
    %v1219 = vpop.f32.mrf.mxu0
    %1220 = vmatprep.mubr.bf16.mxu0 %v598
    %1221 = vmatmul.mubr.bf16.gmra.mxu0 %v597
    %v1222 = vpop.f32.mrf.mxu0
    %v1223 = vadd.f32 %v1091, %v1222
    %v1224 = vpop.f32.mrf.mxu0
    %v1225 = vpop.f32.mrf.mxu0
    %v1226 = vadd.f32 %v1091, %v1225
    %v1227 = vpop.f32.mrf.mxu0
    %1228 = vmatprep.mubr.bf16.mxu0 %v600
    %1229 = vmatmul.mubr.bf16.gmra.mxu0 %v599
    %v1230 = vpop.f32.mrf.mxu0
    %v1231 = vadd.f32 %v1091, %v1230
    %v1232 = vpop.f32.mrf.mxu0
    %v1233 = vpop.f32.mrf.mxu0
    %v1234 = vadd.f32 %v1091, %v1233
    %v1235 = vpop.f32.mrf.mxu0
    %1236 = vmatprep.mubr.bf16.mxu0 %v602
    %1237 = vmatmul.mubr.bf16.gmra.mxu0 %v601
    %v1238 = vpop.f32.mrf.mxu0
    %v1239 = vadd.f32 %v1091, %v1238
    %v1240 = vpop.f32.mrf.mxu0
    %v1241 = vpop.f32.mrf.mxu0
    %v1242 = vadd.f32 %v1091, %v1241
    %v1243 = vpop.f32.mrf.mxu0
    %1244 = vmatprep.mubr.bf16.mxu0 %v604
    %1245 = vmatmul.mubr.bf16.gmra.mxu0 %v603
    %v1246 = vpop.f32.mrf.mxu0
    %v1247 = vadd.f32 %v1091, %v1246
    %v1248 = vpop.f32.mrf.mxu0
    %v1249 = vpop.f32.mrf.mxu0
    %v1250 = vadd.f32 %v1091, %v1249
    %v1251 = vpop.f32.mrf.mxu0
    %1252 = vdwg.mxu0
    %v1253 = vmax.f32 %v1127, 0.0
    %v1254 = vmax.f32 %v1130, 0.0
    %v1255 = vmax.f32 %v1135, 0.0
    %v1256 = vmax.f32 %v1138, 0.0
    %v1257 = vmax.f32 %v1143, 0.0
    %v1258 = vmax.f32 %v1146, 0.0
    %v1259 = vmax.f32 %v1151, 0.0
    %v1260 = vmax.f32 %v1154, 0.0
    %v1261 = vmax.f32 %v1159, 0.0
    %v1262 = vmax.f32 %v1162, 0.0
    %v1263 = vmax.f32 %v1167, 0.0
    %v1264 = vmax.f32 %v1170, 0.0
    %v1265 = vmax.f32 %v1175, 0.0
    %v1266 = vmax.f32 %v1178, 0.0
    %v1267 = vmax.f32 %v1183, 0.0
    %v1268 = vmax.f32 %v1186, 0.0
    %v1269 = vmax.f32 %v1191, 0.0
    %v1270 = vmax.f32 %v1194, 0.0
    %v1271 = vmax.f32 %v1199, 0.0
    %v1272 = vmax.f32 %v1202, 0.0
    %v1273 = vmax.f32 %v1207, 0.0
    %v1274 = vmax.f32 %v1210, 0.0
    %v1275 = vmax.f32 %v1215, 0.0
    %v1276 = vmax.f32 %v1218, 0.0
    %v1277 = vmax.f32 %v1223, 0.0
    %v1278 = vmax.f32 %v1226, 0.0
    %v1279 = vmax.f32 %v1231, 0.0
    %v1280 = vmax.f32 %v1234, 0.0
    %v1281 = vmax.f32 %v1239, 0.0
    %v1282 = vmax.f32 %v1242, 0.0
    %v1283 = vmax.f32 %v1247, 0.0
    %v1284 = vmax.f32 %v1250, 0.0
    %v1285 = vlaneseq
    %v1286 = vshrl.u32 %v1285, 7
    %v1287 = vadd.s32 %v1286, 8
    %v1288 = vlaneseq
    %v1289 = vand.u32 %v1288, 127
    %v1290 = vadd.s32 %v1289, 128
    %v1291 = vmul.u32 %v1286, 16
    %v1292 = vmul.u32 %v1287, 16
    %vm1293 = vcmp.ge.s32.totalorder %v1289, %v1291
    %vm1294 = vcmp.ge.s32.totalorder %v1290, %v1291
    %vm1295 = vcmp.ge.s32.totalorder %v1289, %v1292
    %vm1296 = vcmp.ge.s32.totalorder %v1290, %v1292
    %v1297 = vadd.s32 %v1291, 16
    %v1298 = vadd.s32 %v1292, 16
    %vm1299 = vcmp.lt.s32.totalorder %v1289, %v1297
    %vm1300 = vcmp.lt.s32.totalorder %v1290, %v1297
    %vm1301 = vcmp.lt.s32.totalorder %v1289, %v1298
    %vm1302 = vcmp.lt.s32.totalorder %v1290, %v1298
    %vm1303 = vmand %vm1293, %vm1299
    %vm1304 = vmand %vm1294, %vm1300
    %vm1305 = vmand %vm1295, %vm1301
    %vm1306 = vmand %vm1296, %vm1302
    %v1307 = vsel %vm1303, 0.0625, 0.0
    %v1308 = vsel %vm1304, 0.0625, 0.0
    %v1309 = vsel %vm1305, 0.0625, 0.0
    %v1310 = vsel %vm1306, 0.0625, 0.0
    %v1311 = vpack.c.bf16 %v1309, %v1307
    %v1312 = vpack.c.bf16 %v1310, %v1308
    %v1313 = vpack.c.bf16 %v1254, %v1253
    %v1314 = vpack.c.bf16 %v1256, %v1255
    %v1315 = vpack.c.bf16 %v1258, %v1257
    %v1316 = vpack.c.bf16 %v1260, %v1259
    %v1317 = vpack.c.bf16 %v1262, %v1261
    %v1318 = vpack.c.bf16 %v1264, %v1263
    %v1319 = vpack.c.bf16 %v1266, %v1265
    %v1320 = vpack.c.bf16 %v1268, %v1267
    %v1321 = vpack.c.bf16 %v1270, %v1269
    %v1322 = vpack.c.bf16 %v1272, %v1271
    %v1323 = vpack.c.bf16 %v1274, %v1273
    %v1324 = vpack.c.bf16 %v1276, %v1275
    %v1325 = vpack.c.bf16 %v1278, %v1277
    %v1326 = vpack.c.bf16 %v1280, %v1279
    %v1327 = vpack.c.bf16 %v1282, %v1281
    %v1328 = vpack.c.bf16 %v1284, %v1283
    %1329 = vmatprep.subr.bf16.mxu0 0
    %1330 = vmatpush1.bf16.msra.mxu0 %v1320
    %1331 = vmatprep.subr.bf16.mxu0 0
    %1332 = vmatpush1.bf16.msra.mxu0 %v1319
    %1333 = vmatprep.subr.bf16.mxu0 0
    %1334 = vmatpush1.bf16.msra.mxu0 %v1318
    %1335 = vmatprep.subr.bf16.mxu0 0
    %1336 = vmatpush1.bf16.msra.mxu0 %v1317
    %1337 = vmatprep.subr.bf16.mxu0 0
    %1338 = vmatpush1.bf16.msra.mxu0 %v1316
    %1339 = vmatprep.subr.bf16.mxu0 0
    %1340 = vmatpush1.bf16.msra.mxu0 %v1315
    %1341 = vmatprep.subr.bf16.mxu0 0
    %1342 = vmatpush1.bf16.msra.mxu0 %v1314
    %1343 = vmatprep.subr.bf16.mxu0 0
    %1344 = vmatpush1.bf16.msra.mxu0 %v1313
    %1345 = vmatprep.subr.bf16.mxu0 0
    %1346 = vmatpush2.bf16.msra.mxu0 %v1328
    %1347 = vmatprep.subr.bf16.mxu0 0
    %1348 = vmatpush2.bf16.msra.mxu0 %v1327
    %1349 = vmatprep.subr.bf16.mxu0 0
    %1350 = vmatpush2.bf16.msra.mxu0 %v1326
    %1351 = vmatprep.subr.bf16.mxu0 0
    %1352 = vmatpush2.bf16.msra.mxu0 %v1325
    %1353 = vmatprep.subr.bf16.mxu0 0
    %1354 = vmatpush2.bf16.msra.mxu0 %v1324
    %1355 = vmatprep.subr.bf16.mxu0 0
    %1356 = vmatpush2.bf16.msra.mxu0 %v1323
    %1357 = vmatprep.subr.bf16.mxu0 0
    %1358 = vmatpush2.bf16.msra.mxu0 %v1322
    %1359 = vmatprep.subr.bf16.mxu0 0
    %1360 = vmatpush2.bf16.msra.mxu0 %v1321
    %1361 = vmatprep.mubr.bf16.mxu0 %v1312
    %1362 = vmatmul.mubr.bf16.gmra.mxu0 %v1311
    %v1363 = vpop.f32.mrf.mxu0
    %v1364 = vadd.f32 0.0, %v1363
    %v1365 = vpop.f32.mrf.mxu0
    %v1366 = vpop.f32.mrf.mxu0
    %v1367 = vadd.f32 0.0, %v1366
    %v1368 = vpop.f32.mrf.mxu0
    %1369 = vdwg.mxu0
    %v1370 = vpack.c.bf16 %v1367, %v1364
    %s1371 = scalar_lea.vmem [#allocation6], 128
    %v1372 = vld [vmem:[%s1371] sm:$0xf]
    %v1373 = vld [vmem:[%s1371 + $0x4] sm:$0xf]
    %v1374 = vld [vmem:[%s1371 + $0x8] sm:$0xf]
    %v1375 = vld [vmem:[%s1371 + $0xc] sm:$0xf]
    %v1376 = vld [vmem:[%s1371 + $0x10] sm:$0xf]
    %v1377 = vld [vmem:[%s1371 + $0x14] sm:$0xf]
    %v1378 = vld [vmem:[%s1371 + $0x18] sm:$0xf]
    %v1379 = vld [vmem:[%s1371 + $0x1c] sm:$0xf]
    %v1380 = vld [vmem:[%s1371 + $0x20] sm:$0xf]
    %v1381 = vld [vmem:[%s1371 + $0x24] sm:$0xf]
    %v1382 = vld [vmem:[%s1371 + $0x28] sm:$0xf]
    %v1383 = vld [vmem:[%s1371 + $0x2c] sm:$0xf]
    %v1384 = vld [vmem:[%s1371 + $0x30] sm:$0xf]
    %v1385 = vld [vmem:[%s1371 + $0x34] sm:$0xf]
    %v1386 = vld [vmem:[%s1371 + $0x38] sm:$0xf]
    %v1387 = vld [vmem:[%s1371 + $0x3c] sm:$0xf]
    %v1388 = vlaneseq
    %v1389 = vshrl.u32 %v1388, 7
    %v1390 = vsub.s32 2, %v1389
    %v1391 = vrot.slane %v103, %v1390
    %v1408 = vunpack.c.l.b16 %v1372
    %v1409 = vunpack.c.l.b16 %v1373
    %v1410 = vunpack.c.l.b16 %v1374
    %v1411 = vunpack.c.l.b16 %v1375
    %v1412 = vunpack.c.l.b16 %v1376
    %v1413 = vunpack.c.l.b16 %v1377
    %v1414 = vunpack.c.l.b16 %v1378
    %v1415 = vunpack.c.l.b16 %v1379
    %v1416 = vunpack.c.l.b16 %v1380
    %v1417 = vunpack.c.l.b16 %v1381
    %v1418 = vunpack.c.l.b16 %v1382
    %v1419 = vunpack.c.l.b16 %v1383
    %v1420 = vunpack.c.l.b16 %v1384
    %v1421 = vunpack.c.l.b16 %v1385
    %v1422 = vunpack.c.l.b16 %v1386
    %v1423 = vunpack.c.l.b16 %v1387
    %v1424 = vpack.c.b16 %v1409, %v1408
    %v1425 = vpack.c.b16 %v1411, %v1410
    %v1426 = vpack.c.b16 %v1413, %v1412
    %v1427 = vpack.c.b16 %v1415, %v1414
    %v1428 = vpack.c.b16 %v1417, %v1416
    %v1429 = vpack.c.b16 %v1419, %v1418
    %v1430 = vpack.c.b16 %v1421, %v1420
    %v1431 = vpack.c.b16 %v1423, %v1422
    %1440 = vmatprep.subr.bf16.mxu0 0
    %1441 = vmatpush1.bf16.msra.mxu0 %v1431
    %1442 = vmatprep.subr.bf16.mxu0 0
    %1443 = vmatpush1.bf16.msra.mxu0 %v1430
    %1444 = vmatprep.subr.bf16.mxu0 0
    %1445 = vmatpush1.bf16.msra.mxu0 %v1429
    %1446 = vmatprep.subr.bf16.mxu0 0
    %1447 = vmatpush1.bf16.msra.mxu0 %v1428
    %1448 = vmatprep.subr.bf16.mxu0 0
    %1449 = vmatpush1.bf16.msra.mxu0 %v1427
    %1450 = vmatprep.subr.bf16.mxu0 0
    %1451 = vmatpush1.bf16.msra.mxu0 %v1426
    %1452 = vmatprep.subr.bf16.mxu0 0
    %1453 = vmatpush1.bf16.msra.mxu0 %v1425
    %1454 = vmatprep.subr.bf16.mxu0 0
    %1455 = vmatpush1.bf16.msra.mxu0 %v1424
    %1456 = vmatprep.subr.bf16.mxu0 0
    %1457 = vmatpush2.bf16.msra.mxu0 0
    %1458 = vmatprep.subr.bf16.mxu0 0
    %1459 = vmatpush2.bf16.msra.mxu0 0
    %1460 = vmatprep.subr.bf16.mxu0 0
    %1461 = vmatpush2.bf16.msra.mxu0 0
    %1462 = vmatprep.subr.bf16.mxu0 0
    %1463 = vmatpush2.bf16.msra.mxu0 0
    %1464 = vmatprep.subr.bf16.mxu0 0
    %1465 = vmatpush2.bf16.msra.mxu0 0
    %1466 = vmatprep.subr.bf16.mxu0 0
    %1467 = vmatpush2.bf16.msra.mxu0 0
    %1468 = vmatprep.subr.bf16.mxu0 0
    %1469 = vmatpush2.bf16.msra.mxu0 0
    %1470 = vmatprep.subr.bf16.mxu0 0
    %1471 = vmatpush2.bf16.msra.mxu0 0
    %1472 = vmatprep.mubr.bf16.mxu0 0
    %1473 = vmatmul.mubr.bf16.gmra.mxu0 %v1370
    %v1474 = vpop.f32.mrf.mxu0
    %v1475 = vadd.f32 %v1391, %v1474
    %v1476 = vpop.f32.mrf.mxu0
    %v1477 = vpop.f32.mrf.mxu0
    %v1478 = vadd.f32 %v1391, %v1477
    %v1479 = vpop.f32.mrf.mxu0
    %1480 = vdwg.mxu0
    %v1481 = vmax.f32 %v1475, 0.0
    %v1482 = vmax.f32 %v1478, 0.0
    %v1483 = vpack.c.bf16 %v1482, %v1481
    %s1484 = scalar_lea.vmem [#allocation6], 192
    %v1485 = vld [vmem:[%s1484] sm:$0xf]
    %v1486 = vld [vmem:[%s1484 + $0x4] sm:$0xf]
    %v1487 = vld [vmem:[%s1484 + $0x8] sm:$0xf]
    %v1488 = vld [vmem:[%s1484 + $0xc] sm:$0xf]
    %v1489 = vld [vmem:[%s1484 + $0x10] sm:$0xf]
    %v1490 = vld [vmem:[%s1484 + $0x14] sm:$0xf]
    %v1491 = vld [vmem:[%s1484 + $0x18] sm:$0xf]
    %v1492 = vld [vmem:[%s1484 + $0x1c] sm:$0xf]
    %v1493 = vld [vmem:[%s1484 + $0x20] sm:$0xf]
    %v1494 = vld [vmem:[%s1484 + $0x24] sm:$0xf]
    %v1495 = vld [vmem:[%s1484 + $0x28] sm:$0xf]
    %v1496 = vld [vmem:[%s1484 + $0x2c] sm:$0xf]
    %v1497 = vld [vmem:[%s1484 + $0x30] sm:$0xf]
    %v1498 = vld [vmem:[%s1484 + $0x34] sm:$0xf]
    %v1499 = vld [vmem:[%s1484 + $0x38] sm:$0xf]
    %v1500 = vld [vmem:[%s1484 + $0x3c] sm:$0xf]
    %v1501 = vlaneseq
    %v1502 = vshrl.u32 %v1501, 7
    %v1503 = vsub.s32 3, %v1502
    %v1504 = vrot.slane %v103, %v1503
    %v1521 = vunpack.c.l.b16 %v1485
    %v1522 = vunpack.c.l.b16 %v1486
    %v1523 = vunpack.c.l.b16 %v1487
    %v1524 = vunpack.c.l.b16 %v1488
    %v1525 = vunpack.c.l.b16 %v1489
    %v1526 = vunpack.c.l.b16 %v1490
    %v1527 = vunpack.c.l.b16 %v1491
    %v1528 = vunpack.c.l.b16 %v1492
    %v1529 = vunpack.c.l.b16 %v1493
    %v1530 = vunpack.c.l.b16 %v1494
    %v1531 = vunpack.c.l.b16 %v1495
    %v1532 = vunpack.c.l.b16 %v1496
    %v1533 = vunpack.c.l.b16 %v1497
    %v1534 = vunpack.c.l.b16 %v1498
    %v1535 = vunpack.c.l.b16 %v1499
    %v1536 = vunpack.c.l.b16 %v1500
    %v1537 = vpack.c.b16 %v1522, %v1521
    %v1538 = vpack.c.b16 %v1524, %v1523
    %v1539 = vpack.c.b16 %v1526, %v1525
    %v1540 = vpack.c.b16 %v1528, %v1527
    %v1541 = vpack.c.b16 %v1530, %v1529
    %v1542 = vpack.c.b16 %v1532, %v1531
    %v1543 = vpack.c.b16 %v1534, %v1533
    %v1544 = vpack.c.b16 %v1536, %v1535
    %1553 = vmatprep.subr.bf16.mxu0 0
    %1554 = vmatpush1.bf16.msra.mxu0 %v1544
    %1555 = vmatprep.subr.bf16.mxu0 0
    %1556 = vmatpush1.bf16.msra.mxu0 %v1543
    %1557 = vmatprep.subr.bf16.mxu0 0
    %1558 = vmatpush1.bf16.msra.mxu0 %v1542
    %1559 = vmatprep.subr.bf16.mxu0 0
    %1560 = vmatpush1.bf16.msra.mxu0 %v1541
    %1561 = vmatprep.subr.bf16.mxu0 0
    %1562 = vmatpush1.bf16.msra.mxu0 %v1540
    %1563 = vmatprep.subr.bf16.mxu0 0
    %1564 = vmatpush1.bf16.msra.mxu0 %v1539
    %1565 = vmatprep.subr.bf16.mxu0 0
    %1566 = vmatpush1.bf16.msra.mxu0 %v1538
    %1567 = vmatprep.subr.bf16.mxu0 0
    %1568 = vmatpush1.bf16.msra.mxu0 %v1537
    %1569 = vmatprep.subr.bf16.mxu0 0
    %1570 = vmatpush2.bf16.msra.mxu0 0
    %1571 = vmatprep.subr.bf16.mxu0 0
    %1572 = vmatpush2.bf16.msra.mxu0 0
    %1573 = vmatprep.subr.bf16.mxu0 0
    %1574 = vmatpush2.bf16.msra.mxu0 0
    %1575 = vmatprep.subr.bf16.mxu0 0
    %1576 = vmatpush2.bf16.msra.mxu0 0
    %1577 = vmatprep.subr.bf16.mxu0 0
    %1578 = vmatpush2.bf16.msra.mxu0 0
    %1579 = vmatprep.subr.bf16.mxu0 0
    %1580 = vmatpush2.bf16.msra.mxu0 0
    %1581 = vmatprep.subr.bf16.mxu0 0
    %1582 = vmatpush2.bf16.msra.mxu0 0
    %1583 = vmatprep.subr.bf16.mxu0 0
    %1584 = vmatpush2.bf16.msra.mxu0 0
    %1585 = vmatprep.mubr.bf16.mxu0 0
    %1586 = vmatmul.mubr.bf16.gmra.mxu0 %v1483
    %v1587 = vpop.f32.mrf.mxu0
    %v1588 = vadd.f32 %v1504, %v1587
    %v1589 = vpop.f32.mrf.mxu0
    %v1590 = vpop.f32.mrf.mxu0
    %v1591 = vadd.f32 %v1504, %v1590
    %v1592 = vpop.f32.mrf.mxu0
    %1593 = vdwg.mxu0
    %1594 = vst [vmem:[%s4] sm:$0xff] %v1588
    %1595 = vst [vmem:[%s4 + $0x8] sm:$0xff] %v1591
    // Predicated region
    $region34: #{vulnerability_final_forward.1} parent=1 // pred_check
      _
    $region35: #{vulnerability_final_forward.1} parent=1 // pred_check_branch
      %1597 = sbr.rel (0) target = $region37
    $region36: #{vulnerability_final_forward.1} parent=1 // pred_region
      _
    $region37: #{vulnerability_final_forward.1} parent=1 // pred_fallthru
      _
    // Predicated region
    $region38: #{vulnerability_final_forward.1} parent=1 // pred_check
      _
    $region39: #{vulnerability_final_forward.1} parent=1 // pred_check_branch
      %1599 = sbr.rel (0) target = $region41
    $region40: #{vulnerability_final_forward.1} parent=1 // pred_region
      _
    $region41: #{vulnerability_final_forward.1} parent=1 // pred_fallthru
      _
    %1600 = vsyncpa [#allocation3], 1
    %1601 = vsyncpa [#allocation5], 1
    %1602 = vsyncpa [#allocation8], 1

</llo_original>
